<compile_context>
chip_gen: v5e
topology: v5e:2x2
jax: 0.10.0
libtpu: 0.0.40
codegen_flags: <defaults>
</compile_context>

<pallas_src>
import jax
import jax.numpy as jnp
from jax.experimental import pallas as pl
from jax.experimental.pallas import tpu as pltpu

# ----------------------------- config (small) -----------------------------
FEATURE_SIZE = 4      # feature_size
NUM_LAYERS   = 2      # num_layers
D_MODEL      = 32     # d_model
NHEAD        = 4      # nhead
DIM_FF       = 64     # dim_feedforward
SEQ_LEN      = 8      # seq_length
PRED_LEN     = 3      # prediction_length
BATCH        = 2
HEAD_DIM     = D_MODEL // NHEAD
LN_EPS       = 1e-5
SLAB_COLS    = 3 * D_MODEL      # widest packed row (fused QKV weight = 96)


def _layer_norm(x, w, b):
    mu = jnp.mean(x, axis=-1, keepdims=True)
    var = jnp.mean((x - mu) ** 2, axis=-1, keepdims=True)
    return (x - mu) * jax.lax.rsqrt(var + LN_EPS) * w + b


# --------------------- parameter-slab layout (static) ---------------------
def _align8(n):
    return (n + 7) // 8 * 8


def _slab_layout(batch):
    """Row offsets of every parameter section inside the single [rows, 96]
    slab.  Every section starts on an 8-row (sublane-tile) boundary so all
    in-kernel ref slices are aligned."""
    lay = {}
    r = 0

    def add(name, nrows):
        nonlocal r
        lay[name] = r
        r += _align8(nrows)

    add('w_in', FEATURE_SIZE)            # [F, D]
    add('pos', batch * SEQ_LEN)          # [B*S, D]  (pre-tiled, b_in folded in)
    add('w_out', D_MODEL)                # [D, P]
    add('b_out', 1)                      # [1, P]

    per = {}
    q = 0

    def padd(name, nrows):
        nonlocal q
        per[name] = q
        q += _align8(nrows)

    padd('w_qkv', D_MODEL)               # [D, 3D]
    padd('b_qkv', 1)                     # [1, 3D]
    padd('wo', D_MODEL)                  # [D, D]
    padd('dvec', 6)                      # [6, D]: bo, ln1w, ln1b, ln2w, ln2b, bff2
    padd('wff1', D_MODEL)                # [D, DFF]
    padd('bff1', 1)                      # [1, DFF]
    padd('wff2', DIM_FF)                 # [DFF, D]

    lay['layer0'] = r
    lay['layer_stride'] = q
    lay['rows'] = r + NUM_LAYERS * q
    lay['per'] = per
    return lay


# ------------------------- host-side parameter packing -------------------------
def pack_params(p, batch, lay):
    L, H, D = NUM_LAYERS, NHEAD, D_MODEL
    per = lay['per']
    slab = jnp.zeros((lay['rows'], SLAB_COLS), jnp.float32)

    def put(r, a):
        nonlocal slab
        a = jnp.asarray(a, jnp.float32)
        slab = slab.at[r:r + a.shape[0], 0:a.shape[1]].set(a)

    put(lay['w_in'], p['w_in'])
    # pre-tile positional embedding to [B*S, D] and fold the input-fc bias in
    put(lay['pos'], jnp.tile(p['pos'], (batch, 1)) + p['b_in'])
    put(lay['w_out'], p['w_out'])
    put(lay['b_out'], p['b_out'])

    # per-head [L,H,D,hd] -> per-layer [L,D,H*hd] with head h at cols h*hd:(h+1)*hd
    wq = p['wq'].transpose(0, 2, 1, 3).reshape(L, D, D)
    wk = p['wk'].transpose(0, 2, 1, 3).reshape(L, D, D)
    wv = p['wv'].transpose(0, 2, 1, 3).reshape(L, D, D)
    w_qkv = jnp.concatenate([wq, wk, wv], axis=-1)                 # [L, D, 3D]
    b_qkv = jnp.concatenate([p['bq'].reshape(L, D),
                             p['bk'].reshape(L, D),
                             p['bv'].reshape(L, D)], axis=-1)      # [L, 3D]
    wo = p['wo'].reshape(L, D, D)                                  # [L, D, D]
    dvec = jnp.stack([p['bo'], p['ln1w'], p['ln1b'],
                      p['ln2w'], p['ln2b'], p['bff2']], axis=1)    # [L, 6, D]

    for l in range(L):
        base = lay['layer0'] + l * lay['layer_stride']
        put(base + per['w_qkv'], w_qkv[l])
        put(base + per['b_qkv'], b_qkv[l][None, :])
        put(base + per['wo'],   wo[l])
        put(base + per['dvec'], dvec[l])
        put(base + per['wff1'], p['wff1'][l])
        put(base + per['bff1'], p['bff1'][l][None, :])
        put(base + per['wff2'], p['wff2'][l])
    return slab


# ------------------------------ Pallas kernel ------------------------------
def _make_kernel(lay):
    per = lay['per']

    def kernel(src_ref, slab_ref, out_ref):
        B, S, F = src_ref.shape
        D, H, hd = D_MODEL, NHEAD, HEAD_DIM
        DFF, P, L = DIM_FF, PRED_LEN, NUM_LAYERS

        # ---- input projection + (pre-tiled pos + folded bias); dropout no-op ----
        w_in = slab_ref[lay['w_in']:lay['w_in'] + F, 0:D]
        x = jnp.dot(src_ref[...].reshape(B * S, F), w_in,
                    preferred_element_type=jnp.float32)
        x = x + slab_ref[lay['pos']:lay['pos'] + B * S, 0:D]       # [B*S, D]

        scale = 1.0 / (float(hd) ** 0.5)

        for l in range(L):                          # static, fully unrolled
            base = lay['layer0'] + l * lay['layer_stride']
            w_qkv = slab_ref[base + per['w_qkv']: base + per['w_qkv'] + D, 0:3 * D]
            b_qkv = slab_ref[base + per['b_qkv']: base + per['b_qkv'] + 1, 0:3 * D]
            wo    = slab_ref[base + per['wo']:    base + per['wo'] + D,    0:D]
            dv    = slab_ref[base + per['dvec']:  base + per['dvec'] + 6,  0:D]
            wff1  = slab_ref[base + per['wff1']:  base + per['wff1'] + D,  0:DFF]
            bff1  = slab_ref[base + per['bff1']:  base + per['bff1'] + 1,  0:DFF]
            wff2  = slab_ref[base + per['wff2']:  base + per['wff2'] + DFF, 0:D]

            # -------- fused QKV projection: one [B*S,D] x [D,3D] matmul --------
            qkv = jnp.dot(x, w_qkv, preferred_element_type=jnp.float32) + b_qkv

            # ---- head-batched attention: stack heads on a LEADING axis ----
            # z = h*B + b ; built with leading-dim concats of lane slices only
            # (no minor-dim transpose / lane-unfold reshape).
            q_all = jnp.concatenate(
                [qkv[:, h * hd:(h + 1) * hd].reshape(B, S, hd) for h in range(H)],
                axis=0)                                            # [H*B, S, hd]
            k_all = jnp.concatenate(
                [qkv[:, D + h * hd: D + (h + 1) * hd].reshape(B, S, hd)
                 for h in range(H)], axis=0)
            v_all = jnp.concatenate(
                [qkv[:, 2 * D + h * hd: 2 * D + (h + 1) * hd].reshape(B, S, hd)
                 for h in range(H)], axis=0)

            sc = jnp.einsum('zqe,zke->zqk', q_all, k_all,
                            preferred_element_type=jnp.float32) * scale
            sc = sc - jnp.max(sc, axis=-1, keepdims=True)
            e = jnp.exp(sc)
            # exact divide on purpose: approx reciprocal saves ~nothing here
            pr = e / jnp.sum(e, axis=-1, keepdims=True)
            ctx = jnp.einsum('zqk,zke->zqe', pr, v_all,
                             preferred_element_type=jnp.float32)   # [H*B, S, hd]

            # heads back onto lanes -> [B*S, D] for the fused output projection
            ctx2 = jnp.concatenate(
                [ctx[h * B:(h + 1) * B].reshape(B * S, hd) for h in range(H)],
                axis=-1)

            # ---------------- fused output projection (one matmul) ----------------
            attn = jnp.dot(ctx2, wo, preferred_element_type=jnp.float32) + dv[0:1]

            # residual + LayerNorm 1 (post-norm, PyTorch default norm_first=False)
            x = _layer_norm(x + attn, dv[1:2], dv[2:3])

            # ------------------------------ FFN ------------------------------
            h1 = jnp.maximum(
                jnp.dot(x, wff1, preferred_element_type=jnp.float32) + bff1, 0.0)
            ff = jnp.dot(h1, wff2, preferred_element_type=jnp.float32) + dv[5:6]

            # residual + LayerNorm 2
            x = _layer_norm(x + ff, dv[3:4], dv[4:5])

        # ---- last time step (rows b*S + S-1, static slices) + fc_out ----
        last = jnp.concatenate(
            [x[b * S + S - 1: b * S + S, :] for b in range(B)], axis=0)  # [B, D]
        w_out = slab_ref[lay['w_out']:lay['w_out'] + D, 0:P]
        b_out = slab_ref[lay['b_out']:lay['b_out'] + 1, 0:P]
        out_ref[...] = (jnp.dot(last, w_out, preferred_element_type=jnp.float32)
                        + b_out).astype(out_ref.dtype)

    return kernel


# ------------------------------ wrapper ------------------------------
def time_series_transformer(src, p):
    B = src.shape[0]
    lay = _slab_layout(B)
    slab = pack_params(p, B, lay)
    kernel = _make_kernel(lay)

    # Entire working set (~300 KiB incl. padding) fits trivially in VMEM on
    # every generation; single invocation, no grid, no pipelining needed.
    return pl.pallas_call(
        kernel,
        out_shape=jax.ShapeDtypeStruct((B, PRED_LEN), jnp.float32),
        in_specs=[pl.BlockSpec(memory_space=pltpu.MemorySpace.VMEM),
                  pl.BlockSpec(memory_space=pltpu.MemorySpace.VMEM)],
        out_specs=pl.BlockSpec(memory_space=pltpu.MemorySpace.VMEM),
    )(src, slab)


# ----------------------- deterministic parameter init -----------------------
def build_params(key):
    ks = jax.random.split(key, 17)

    def nrm(k, shape, scale=0.1):
        return (scale * jax.random.normal(k, shape)).astype(jnp.float32)

    L, H, D, hd, F, DFF, S, P = (NUM_LAYERS, NHEAD, D_MODEL, HEAD_DIM,
                                 FEATURE_SIZE, DIM_FF, SEQ_LEN, PRED_LEN)
    return {
        'w_in': nrm(ks[0], (F, D)),
        'b_in': nrm(ks[1], (1, D), 0.01),
        'pos':  nrm(ks[2], (S, D), 0.02),
        'wq':   nrm(ks[3], (L, H, D, hd)),
        'bq':   nrm(ks[4], (L, H, 1, hd), 0.01),
        'wk':   nrm(ks[5], (L, H, D, hd)),
        'bk':   nrm(ks[6], (L, H, 1, hd), 0.01),
        'wv':   nrm(ks[7], (L, H, D, hd)),
        'bv':   nrm(ks[8], (L, H, 1, hd), 0.01),
        'wo':   nrm(ks[9], (L, H, hd, D)),
        'bo':   nrm(ks[10], (L, D), 0.01),
        'ln1w': jnp.ones((L, D), jnp.float32),
        'ln1b': jnp.zeros((L, D), jnp.float32),
        'ln2w': jnp.ones((L, D), jnp.float32),
        'ln2b': jnp.zeros((L, D), jnp.float32),
        'wff1': nrm(ks[11], (L, D, DFF)),
        'bff1': nrm(ks[12], (L, DFF), 0.01),
        'wff2': nrm(ks[13], (L, DFF, D)),
        'bff2': nrm(ks[14], (L, D), 0.01),
        'w_out': nrm(ks[15], (D, P)),
        'b_out': nrm(ks[16], (1, P), 0.01),
    }


# --------------------------- pure-JAX reference ---------------------------
def ref_forward(src, p):
    x = jnp.einsum('bsf,fd->bsd', src, p['w_in']) + p['b_in'][0]
    x = x + p['pos'][None]
    for l in range(NUM_LAYERS):
        att = jnp.zeros_like(x)
        for h in range(NHEAD):
            q = jnp.einsum('bsd,de->bse', x, p['wq'][l, h]) + p['bq'][l, h, 0]
            k = jnp.einsum('bsd,de->bse', x, p['wk'][l, h]) + p['bk'][l, h, 0]
            v = jnp.einsum('bsd,de->bse', x, p['wv'][l, h]) + p['bv'][l, h, 0]
            sc = jnp.einsum('bqe,bke->bqk', q, k) / jnp.sqrt(float(HEAD_DIM))
            w = jax.nn.softmax(sc, axis=-1)
            ctx = jnp.einsum('bqk,bke->bqe', w, v)
            att = att + jnp.einsum('bqe,ed->bqd', ctx, p['wo'][l, h])
        att = att + p['bo'][l]
        x = _layer_norm(x + att, p['ln1w'][l], p['ln1b'][l])
        h1 = jax.nn.relu(jnp.einsum('bsd,df->bsf', x, p['wff1'][l]) + p['bff1'][l])
        ff = jnp.einsum('bsf,fd->bsd', h1, p['wff2'][l]) + p['bff2'][l]
        x = _layer_norm(x + ff, p['ln2w'][l], p['ln2b'][l])
    last = x[:, -1, :]
    return last @ p['w_out'] + p['b_out'][0]


if __name__ == "__main__":
    key = jax.random.PRNGKey(0)
    pkey, xkey = jax.random.split(key)
    params = build_params(pkey)
    src = jax.random.normal(xkey, (BATCH, SEQ_LEN, FEATURE_SIZE),
                            dtype=jnp.float32)

    out = jax.block_until_ready(time_series_transformer(src, params))
    ref = ref_forward(src, params)

    assert out.shape == (BATCH, PRED_LEN), out.shape
    if not jnp.allclose(out, ref, atol=1e-3, rtol=1e-3):
        raise AssertionError(
            f"kernel/reference mismatch: max abs err "
            f"{float(jnp.max(jnp.abs(out - ref)))}")
    print("KERNEL_OK")
</pallas_src>

<mosaic_0001>
module attributes {stable_mosaic.version = 11 : i64} {
  func.func @kernel(%arg0: memref<2x8x4xf32, #tpu.memory_space<vmem>>, %arg1: memref<432x96xf32, #tpu.memory_space<vmem>>, %arg2: memref<2x3xf32, #tpu.memory_space<vmem>>) attributes {dimension_semantics = [], scalar_prefetch = 0 : i64, scratch_operands = 0 : i64, tpu.core_type = #tpu.core_type<tc>} {
    %c0 = arith.constant 0 : index
    %c0_0 = arith.constant 0 : index
    %0 = vector.load %arg1[%c0, %c0_0] : memref<432x96xf32, #tpu.memory_space<vmem>>, vector<4x32xf32>
    %c0_1 = arith.constant 0 : index
    %c0_2 = arith.constant 0 : index
    %c0_3 = arith.constant 0 : index
    %1 = vector.load %arg0[%c0_1, %c0_2, %c0_3] : memref<2x8x4xf32, #tpu.memory_space<vmem>>, vector<2x8x4xf32>
    %2 = vector.shape_cast %1 : vector<2x8x4xf32> to vector<16x4xf32>
    %cst = arith.constant dense<0.000000e+00> : vector<16x32xf32>
    %3 = tpu.matmul %2, %0, %cst {dimension_numbers = #tpu.dot_dimension_numbers<[1], [0], [0], [1], [0, 0, 1, 1], [], []>} : vector<16x4xf32>, vector<4x32xf32>, vector<16x32xf32> -> vector<16x32xf32>
    %c8 = arith.constant 8 : index
    %c0_4 = arith.constant 0 : index
    %4 = vector.load %arg1[%c8, %c0_4] : memref<432x96xf32, #tpu.memory_space<vmem>>, vector<16x32xf32>
    %5 = arith.addf %3, %4 : vector<16x32xf32>
    %c64 = arith.constant 64 : index
    %c0_5 = arith.constant 0 : index
    %6 = vector.load %arg1[%c64, %c0_5] : memref<432x96xf32, #tpu.memory_space<vmem>>, vector<32x96xf32>
    %c96 = arith.constant 96 : index
    %c0_6 = arith.constant 0 : index
    %7 = vector.load %arg1[%c96, %c0_6] : memref<432x96xf32, #tpu.memory_space<vmem>>, vector<1x96xf32>
    %c104 = arith.constant 104 : index
    %c0_7 = arith.constant 0 : index
    %8 = vector.load %arg1[%c104, %c0_7] : memref<432x96xf32, #tpu.memory_space<vmem>>, vector<32x32xf32>
    %c136 = arith.constant 136 : index
    %c0_8 = arith.constant 0 : index
    %9 = vector.load %arg1[%c136, %c0_8] : memref<432x96xf32, #tpu.memory_space<vmem>>, vector<6x32xf32>
    %c144 = arith.constant 144 : index
    %c0_9 = arith.constant 0 : index
    %10 = vector.load %arg1[%c144, %c0_9] : memref<432x96xf32, #tpu.memory_space<vmem>>, vector<32x64xf32>
    %c176 = arith.constant 176 : index
    %c0_10 = arith.constant 0 : index
    %11 = vector.load %arg1[%c176, %c0_10] : memref<432x96xf32, #tpu.memory_space<vmem>>, vector<1x64xf32>
    %c184 = arith.constant 184 : index
    %c0_11 = arith.constant 0 : index
    %12 = vector.load %arg1[%c184, %c0_11] : memref<432x96xf32, #tpu.memory_space<vmem>>, vector<64x32xf32>
    %cst_12 = arith.constant dense<0.000000e+00> : vector<16x96xf32>
    %13 = tpu.matmul %5, %6, %cst_12 {dimension_numbers = #tpu.dot_dimension_numbers<[1], [0], [0], [1], [0, 0, 1, 1], [], []>} : vector<16x32xf32>, vector<32x96xf32>, vector<16x96xf32> -> vector<16x96xf32>
    %14 = vector.broadcast %7 : vector<1x96xf32> to vector<16x96xf32>
    %15 = arith.addf %13, %14 : vector<16x96xf32>
    %16 = vector.extract_strided_slice %15 {offsets = [0, 0], sizes = [16, 8], strides = [1, 1]} : vector<16x96xf32> to vector<16x8xf32>
    %17 = vector.shape_cast %16 : vector<16x8xf32> to vector<2x8x8xf32>
    %18 = vector.extract_strided_slice %15 {offsets = [0, 8], sizes = [16, 8], strides = [1, 1]} : vector<16x96xf32> to vector<16x8xf32>
    %19 = vector.shape_cast %18 : vector<16x8xf32> to vector<2x8x8xf32>
    %20 = vector.extract_strided_slice %15 {offsets = [0, 16], sizes = [16, 8], strides = [1, 1]} : vector<16x96xf32> to vector<16x8xf32>
    %21 = vector.shape_cast %20 : vector<16x8xf32> to vector<2x8x8xf32>
    %22 = vector.extract_strided_slice %15 {offsets = [0, 24], sizes = [16, 8], strides = [1, 1]} : vector<16x96xf32> to vector<16x8xf32>
    %23 = vector.shape_cast %22 : vector<16x8xf32> to vector<2x8x8xf32>
    %24 = tpu.concatenate %17, %19, %21, %23 in 0 : vector<2x8x8xf32>, vector<2x8x8xf32>, vector<2x8x8xf32>, vector<2x8x8xf32> -> vector<8x8x8xf32>
    %25 = vector.extract_strided_slice %15 {offsets = [0, 32], sizes = [16, 8], strides = [1, 1]} : vector<16x96xf32> to vector<16x8xf32>
    %26 = vector.shape_cast %25 : vector<16x8xf32> to vector<2x8x8xf32>
    %27 = vector.extract_strided_slice %15 {offsets = [0, 40], sizes = [16, 8], strides = [1, 1]} : vector<16x96xf32> to vector<16x8xf32>
    %28 = vector.shape_cast %27 : vector<16x8xf32> to vector<2x8x8xf32>
    %29 = vector.extract_strided_slice %15 {offsets = [0, 48], sizes = [16, 8], strides = [1, 1]} : vector<16x96xf32> to vector<16x8xf32>
    %30 = vector.shape_cast %29 : vector<16x8xf32> to vector<2x8x8xf32>
    %31 = vector.extract_strided_slice %15 {offsets = [0, 56], sizes = [16, 8], strides = [1, 1]} : vector<16x96xf32> to vector<16x8xf32>
    %32 = vector.shape_cast %31 : vector<16x8xf32> to vector<2x8x8xf32>
    %33 = tpu.concatenate %26, %28, %30, %32 in 0 : vector<2x8x8xf32>, vector<2x8x8xf32>, vector<2x8x8xf32>, vector<2x8x8xf32> -> vector<8x8x8xf32>
    %34 = vector.extract_strided_slice %15 {offsets = [0, 64], sizes = [16, 8], strides = [1, 1]} : vector<16x96xf32> to vector<16x8xf32>
    %35 = vector.shape_cast %34 : vector<16x8xf32> to vector<2x8x8xf32>
    %36 = vector.extract_strided_slice %15 {offsets = [0, 72], sizes = [16, 8], strides = [1, 1]} : vector<16x96xf32> to vector<16x8xf32>
    %37 = vector.shape_cast %36 : vector<16x8xf32> to vector<2x8x8xf32>
    %38 = vector.extract_strided_slice %15 {offsets = [0, 80], sizes = [16, 8], strides = [1, 1]} : vector<16x96xf32> to vector<16x8xf32>
    %39 = vector.shape_cast %38 : vector<16x8xf32> to vector<2x8x8xf32>
    %40 = vector.extract_strided_slice %15 {offsets = [0, 88], sizes = [16, 8], strides = [1, 1]} : vector<16x96xf32> to vector<16x8xf32>
    %41 = vector.shape_cast %40 : vector<16x8xf32> to vector<2x8x8xf32>
    %42 = tpu.concatenate %35, %37, %39, %41 in 0 : vector<2x8x8xf32>, vector<2x8x8xf32>, vector<2x8x8xf32>, vector<2x8x8xf32> -> vector<8x8x8xf32>
    "tpu.trace_start"() <{level = 10 : i32, message = "zqe,zke->zqk"}> : () -> ()
    %cst_13 = arith.constant dense<0.000000e+00> : vector<8x8x8xf32>
    %43 = tpu.matmul %24, %33, %cst_13 {dimension_numbers = #tpu.dot_dimension_numbers<[2], [2], [1], [1], [0, 0, 0, 1, 1, 1], [0], [0]>} : vector<8x8x8xf32>, vector<8x8x8xf32>, vector<8x8x8xf32> -> vector<8x8x8xf32>
    "tpu.trace_stop"() : () -> ()
    %cst_14 = arith.constant 0.353553385 : f32
    %44 = vector.broadcast %cst_14 : f32 to vector<8x8x8xf32>
    %45 = arith.mulf %43, %44 : vector<8x8x8xf32>
    %cst_15 = arith.constant dense<0xFF800000> : vector<8x8xf32>
    %46 = vector.multi_reduction <maximumf>, %45, %cst_15 [2] : vector<8x8x8xf32> to vector<8x8xf32>
    %47 = vector.shape_cast %46 : vector<8x8xf32> to vector<8x8x1xf32>
    %48 = vector.broadcast %47 : vector<8x8x1xf32> to vector<8x8x8xf32>
    %49 = arith.subf %45, %48 : vector<8x8x8xf32>
    %50 = math.exp %49 : vector<8x8x8xf32>
    %cst_16 = arith.constant dense<0.000000e+00> : vector<8x8xf32>
    %51 = vector.multi_reduction <add>, %50, %cst_16 [2] : vector<8x8x8xf32> to vector<8x8xf32>
    %52 = vector.shape_cast %51 : vector<8x8xf32> to vector<8x8x1xf32>
    %53 = vector.broadcast %52 : vector<8x8x1xf32> to vector<8x8x8xf32>
    %54 = arith.divf %50, %53 : vector<8x8x8xf32>
    "tpu.trace_start"() <{level = 10 : i32, message = "zqk,zke->zqe"}> : () -> ()
    %cst_17 = arith.constant dense<0.000000e+00> : vector<8x8x8xf32>
    %55 = tpu.matmul %54, %42, %cst_17 {dimension_numbers = #tpu.dot_dimension_numbers<[2], [1], [1], [2], [0, 0, 0, 1, 1, 2], [0], [0]>} : vector<8x8x8xf32>, vector<8x8x8xf32>, vector<8x8x8xf32> -> vector<8x8x8xf32>
    "tpu.trace_stop"() : () -> ()
    %56 = vector.extract_strided_slice %55 {offsets = [0, 0, 0], sizes = [2, 8, 8], strides = [1, 1, 1]} : vector<8x8x8xf32> to vector<2x8x8xf32>
    %57 = vector.shape_cast %56 : vector<2x8x8xf32> to vector<16x8xf32>
    %58 = vector.extract_strided_slice %55 {offsets = [2, 0, 0], sizes = [2, 8, 8], strides = [1, 1, 1]} : vector<8x8x8xf32> to vector<2x8x8xf32>
    %59 = vector.shape_cast %58 : vector<2x8x8xf32> to vector<16x8xf32>
    %60 = vector.extract_strided_slice %55 {offsets = [4, 0, 0], sizes = [2, 8, 8], strides = [1, 1, 1]} : vector<8x8x8xf32> to vector<2x8x8xf32>
    %61 = vector.shape_cast %60 : vector<2x8x8xf32> to vector<16x8xf32>
    %62 = vector.extract_strided_slice %55 {offsets = [6, 0, 0], sizes = [2, 8, 8], strides = [1, 1, 1]} : vector<8x8x8xf32> to vector<2x8x8xf32>
    %63 = vector.shape_cast %62 : vector<2x8x8xf32> to vector<16x8xf32>
    %64 = tpu.concatenate %57, %59, %61, %63 in 1 : vector<16x8xf32>, vector<16x8xf32>, vector<16x8xf32>, vector<16x8xf32> -> vector<16x32xf32>
    %cst_18 = arith.constant dense<0.000000e+00> : vector<16x32xf32>
    %65 = tpu.matmul %64, %8, %cst_18 {dimension_numbers = #tpu.dot_dimension_numbers<[1], [0], [0], [1], [0, 0, 1, 1], [], []>} : vector<16x32xf32>, vector<32x32xf32>, vector<16x32xf32> -> vector<16x32xf32>
    %66 = vector.extract_strided_slice %9 {offsets = [0, 0], sizes = [1, 32], strides = [1, 1]} : vector<6x32xf32> to vector<1x32xf32>
    %67 = vector.broadcast %66 : vector<1x32xf32> to vector<16x32xf32>
    %68 = arith.addf %65, %67 : vector<16x32xf32>
    %69 = arith.addf %5, %68 : vector<16x32xf32>
    %70 = vector.extract_strided_slice %9 {offsets = [1, 0], sizes = [1, 32], strides = [1, 1]} : vector<6x32xf32> to vector<1x32xf32>
    %71 = vector.extract_strided_slice %9 {offsets = [2, 0], sizes = [1, 32], strides = [1, 1]} : vector<6x32xf32> to vector<1x32xf32>
    %cst_19 = arith.constant dense<0.000000e+00> : vector<16xf32>
    %72 = vector.multi_reduction <add>, %69, %cst_19 [1] : vector<16x32xf32> to vector<16xf32>
    %73 = vector.shape_cast %72 : vector<16xf32> to vector<16x1xf32>
    %cst_20 = arith.constant 3.200000e+01 : f32
    %74 = vector.broadcast %cst_20 : f32 to vector<16x1xf32>
    %75 = arith.divf %73, %74 : vector<16x1xf32>
    %76 = vector.broadcast %75 : vector<16x1xf32> to vector<16x32xf32>
    %77 = arith.subf %69, %76 : vector<16x32xf32>
    %78 = arith.mulf %77, %77 : vector<16x32xf32>
    %cst_21 = arith.constant dense<0.000000e+00> : vector<16xf32>
    %79 = vector.multi_reduction <add>, %78, %cst_21 [1] : vector<16x32xf32> to vector<16xf32>
    %80 = vector.shape_cast %79 : vector<16xf32> to vector<16x1xf32>
    %cst_22 = arith.constant 3.200000e+01 : f32
    %81 = vector.broadcast %cst_22 : f32 to vector<16x1xf32>
    %82 = arith.divf %80, %81 : vector<16x1xf32>
    %83 = vector.broadcast %75 : vector<16x1xf32> to vector<16x32xf32>
    %84 = arith.subf %69, %83 : vector<16x32xf32>
    %cst_23 = arith.constant 9.99999974E-6 : f32
    %85 = vector.broadcast %cst_23 : f32 to vector<16x1xf32>
    %86 = arith.addf %82, %85 : vector<16x1xf32>
    %87 = math.rsqrt %86 : vector<16x1xf32>
    %88 = vector.broadcast %87 : vector<16x1xf32> to vector<16x32xf32>
    %89 = arith.mulf %84, %88 : vector<16x32xf32>
    %90 = vector.broadcast %70 : vector<1x32xf32> to vector<16x32xf32>
    %91 = arith.mulf %89, %90 : vector<16x32xf32>
    %92 = vector.broadcast %71 : vector<1x32xf32> to vector<16x32xf32>
    %93 = arith.addf %91, %92 : vector<16x32xf32>
    %cst_24 = arith.constant dense<0.000000e+00> : vector<16x64xf32>
    %94 = tpu.matmul %93, %10, %cst_24 {dimension_numbers = #tpu.dot_dimension_numbers<[1], [0], [0], [1], [0, 0, 1, 1], [], []>} : vector<16x32xf32>, vector<32x64xf32>, vector<16x64xf32> -> vector<16x64xf32>
    %95 = vector.broadcast %11 : vector<1x64xf32> to vector<16x64xf32>
    %96 = arith.addf %94, %95 : vector<16x64xf32>
    %cst_25 = arith.constant 0.000000e+00 : f32
    %97 = vector.broadcast %cst_25 : f32 to vector<16x64xf32>
    %98 = arith.maximumf %96, %97 : vector<16x64xf32>
    %cst_26 = arith.constant dense<0.000000e+00> : vector<16x32xf32>
    %99 = tpu.matmul %98, %12, %cst_26 {dimension_numbers = #tpu.dot_dimension_numbers<[1], [0], [0], [1], [0, 0, 1, 1], [], []>} : vector<16x64xf32>, vector<64x32xf32>, vector<16x32xf32> -> vector<16x32xf32>
    %100 = vector.extract_strided_slice %9 {offsets = [5, 0], sizes = [1, 32], strides = [1, 1]} : vector<6x32xf32> to vector<1x32xf32>
    %101 = vector.broadcast %100 : vector<1x32xf32> to vector<16x32xf32>
    %102 = arith.addf %99, %101 : vector<16x32xf32>
    %103 = arith.addf %93, %102 : vector<16x32xf32>
    %104 = vector.extract_strided_slice %9 {offsets = [3, 0], sizes = [1, 32], strides = [1, 1]} : vector<6x32xf32> to vector<1x32xf32>
    %105 = vector.extract_strided_slice %9 {offsets = [4, 0], sizes = [1, 32], strides = [1, 1]} : vector<6x32xf32> to vector<1x32xf32>
    %cst_27 = arith.constant dense<0.000000e+00> : vector<16xf32>
    %106 = vector.multi_reduction <add>, %103, %cst_27 [1] : vector<16x32xf32> to vector<16xf32>
    %107 = vector.shape_cast %106 : vector<16xf32> to vector<16x1xf32>
    %cst_28 = arith.constant 3.200000e+01 : f32
    %108 = vector.broadcast %cst_28 : f32 to vector<16x1xf32>
    %109 = arith.divf %107, %108 : vector<16x1xf32>
    %110 = vector.broadcast %109 : vector<16x1xf32> to vector<16x32xf32>
    %111 = arith.subf %103, %110 : vector<16x32xf32>
    %112 = arith.mulf %111, %111 : vector<16x32xf32>
    %cst_29 = arith.constant dense<0.000000e+00> : vector<16xf32>
    %113 = vector.multi_reduction <add>, %112, %cst_29 [1] : vector<16x32xf32> to vector<16xf32>
    %114 = vector.shape_cast %113 : vector<16xf32> to vector<16x1xf32>
    %cst_30 = arith.constant 3.200000e+01 : f32
    %115 = vector.broadcast %cst_30 : f32 to vector<16x1xf32>
    %116 = arith.divf %114, %115 : vector<16x1xf32>
    %117 = vector.broadcast %109 : vector<16x1xf32> to vector<16x32xf32>
    %118 = arith.subf %103, %117 : vector<16x32xf32>
    %cst_31 = arith.constant 9.99999974E-6 : f32
    %119 = vector.broadcast %cst_31 : f32 to vector<16x1xf32>
    %120 = arith.addf %116, %119 : vector<16x1xf32>
    %121 = math.rsqrt %120 : vector<16x1xf32>
    %122 = vector.broadcast %121 : vector<16x1xf32> to vector<16x32xf32>
    %123 = arith.mulf %118, %122 : vector<16x32xf32>
    %124 = vector.broadcast %104 : vector<1x32xf32> to vector<16x32xf32>
    %125 = arith.mulf %123, %124 : vector<16x32xf32>
    %126 = vector.broadcast %105 : vector<1x32xf32> to vector<16x32xf32>
    %127 = arith.addf %125, %126 : vector<16x32xf32>
    %c248 = arith.constant 248 : index
    %c0_32 = arith.constant 0 : index
    %128 = vector.load %arg1[%c248, %c0_32] : memref<432x96xf32, #tpu.memory_space<vmem>>, vector<32x96xf32>
    %c280 = arith.constant 280 : index
    %c0_33 = arith.constant 0 : index
    %129 = vector.load %arg1[%c280, %c0_33] : memref<432x96xf32, #tpu.memory_space<vmem>>, vector<1x96xf32>
    %c288 = arith.constant 288 : index
    %c0_34 = arith.constant 0 : index
    %130 = vector.load %arg1[%c288, %c0_34] : memref<432x96xf32, #tpu.memory_space<vmem>>, vector<32x32xf32>
    %c320 = arith.constant 320 : index
    %c0_35 = arith.constant 0 : index
    %131 = vector.load %arg1[%c320, %c0_35] : memref<432x96xf32, #tpu.memory_space<vmem>>, vector<6x32xf32>
    %c328 = arith.constant 328 : index
    %c0_36 = arith.constant 0 : index
    %132 = vector.load %arg1[%c328, %c0_36] : memref<432x96xf32, #tpu.memory_space<vmem>>, vector<32x64xf32>
    %c360 = arith.constant 360 : index
    %c0_37 = arith.constant 0 : index
    %133 = vector.load %arg1[%c360, %c0_37] : memref<432x96xf32, #tpu.memory_space<vmem>>, vector<1x64xf32>
    %c368 = arith.constant 368 : index
    %c0_38 = arith.constant 0 : index
    %134 = vector.load %arg1[%c368, %c0_38] : memref<432x96xf32, #tpu.memory_space<vmem>>, vector<64x32xf32>
    %cst_39 = arith.constant dense<0.000000e+00> : vector<16x96xf32>
    %135 = tpu.matmul %127, %128, %cst_39 {dimension_numbers = #tpu.dot_dimension_numbers<[1], [0], [0], [1], [0, 0, 1, 1], [], []>} : vector<16x32xf32>, vector<32x96xf32>, vector<16x96xf32> -> vector<16x96xf32>
    %136 = vector.broadcast %129 : vector<1x96xf32> to vector<16x96xf32>
    %137 = arith.addf %135, %136 : vector<16x96xf32>
    %138 = vector.extract_strided_slice %137 {offsets = [0, 0], sizes = [16, 8], strides = [1, 1]} : vector<16x96xf32> to vector<16x8xf32>
    %139 = vector.shape_cast %138 : vector<16x8xf32> to vector<2x8x8xf32>
    %140 = vector.extract_strided_slice %137 {offsets = [0, 8], sizes = [16, 8], strides = [1, 1]} : vector<16x96xf32> to vector<16x8xf32>
    %141 = vector.shape_cast %140 : vector<16x8xf32> to vector<2x8x8xf32>
    %142 = vector.extract_strided_slice %137 {offsets = [0, 16], sizes = [16, 8], strides = [1, 1]} : vector<16x96xf32> to vector<16x8xf32>
    %143 = vector.shape_cast %142 : vector<16x8xf32> to vector<2x8x8xf32>
    %144 = vector.extract_strided_slice %137 {offsets = [0, 24], sizes = [16, 8], strides = [1, 1]} : vector<16x96xf32> to vector<16x8xf32>
    %145 = vector.shape_cast %144 : vector<16x8xf32> to vector<2x8x8xf32>
    %146 = tpu.concatenate %139, %141, %143, %145 in 0 : vector<2x8x8xf32>, vector<2x8x8xf32>, vector<2x8x8xf32>, vector<2x8x8xf32> -> vector<8x8x8xf32>
    %147 = vector.extract_strided_slice %137 {offsets = [0, 32], sizes = [16, 8], strides = [1, 1]} : vector<16x96xf32> to vector<16x8xf32>
    %148 = vector.shape_cast %147 : vector<16x8xf32> to vector<2x8x8xf32>
    %149 = vector.extract_strided_slice %137 {offsets = [0, 40], sizes = [16, 8], strides = [1, 1]} : vector<16x96xf32> to vector<16x8xf32>
    %150 = vector.shape_cast %149 : vector<16x8xf32> to vector<2x8x8xf32>
    %151 = vector.extract_strided_slice %137 {offsets = [0, 48], sizes = [16, 8], strides = [1, 1]} : vector<16x96xf32> to vector<16x8xf32>
    %152 = vector.shape_cast %151 : vector<16x8xf32> to vector<2x8x8xf32>
    %153 = vector.extract_strided_slice %137 {offsets = [0, 56], sizes = [16, 8], strides = [1, 1]} : vector<16x96xf32> to vector<16x8xf32>
    %154 = vector.shape_cast %153 : vector<16x8xf32> to vector<2x8x8xf32>
    %155 = tpu.concatenate %148, %150, %152, %154 in 0 : vector<2x8x8xf32>, vector<2x8x8xf32>, vector<2x8x8xf32>, vector<2x8x8xf32> -> vector<8x8x8xf32>
    %156 = vector.extract_strided_slice %137 {offsets = [0, 64], sizes = [16, 8], strides = [1, 1]} : vector<16x96xf32> to vector<16x8xf32>
    %157 = vector.shape_cast %156 : vector<16x8xf32> to vector<2x8x8xf32>
    %158 = vector.extract_strided_slice %137 {offsets = [0, 72], sizes = [16, 8], strides = [1, 1]} : vector<16x96xf32> to vector<16x8xf32>
    %159 = vector.shape_cast %158 : vector<16x8xf32> to vector<2x8x8xf32>
    %160 = vector.extract_strided_slice %137 {offsets = [0, 80], sizes = [16, 8], strides = [1, 1]} : vector<16x96xf32> to vector<16x8xf32>
    %161 = vector.shape_cast %160 : vector<16x8xf32> to vector<2x8x8xf32>
    %162 = vector.extract_strided_slice %137 {offsets = [0, 88], sizes = [16, 8], strides = [1, 1]} : vector<16x96xf32> to vector<16x8xf32>
    %163 = vector.shape_cast %162 : vector<16x8xf32> to vector<2x8x8xf32>
    %164 = tpu.concatenate %157, %159, %161, %163 in 0 : vector<2x8x8xf32>, vector<2x8x8xf32>, vector<2x8x8xf32>, vector<2x8x8xf32> -> vector<8x8x8xf32>
    "tpu.trace_start"() <{level = 10 : i32, message = "zqe,zke->zqk"}> : () -> ()
    %cst_40 = arith.constant dense<0.000000e+00> : vector<8x8x8xf32>
    %165 = tpu.matmul %146, %155, %cst_40 {dimension_numbers = #tpu.dot_dimension_numbers<[2], [2], [1], [1], [0, 0, 0, 1, 1, 1], [0], [0]>} : vector<8x8x8xf32>, vector<8x8x8xf32>, vector<8x8x8xf32> -> vector<8x8x8xf32>
    "tpu.trace_stop"() : () -> ()
    %cst_41 = arith.constant 0.353553385 : f32
    %166 = vector.broadcast %cst_41 : f32 to vector<8x8x8xf32>
    %167 = arith.mulf %165, %166 : vector<8x8x8xf32>
    %cst_42 = arith.constant dense<0xFF800000> : vector<8x8xf32>
    %168 = vector.multi_reduction <maximumf>, %167, %cst_42 [2] : vector<8x8x8xf32> to vector<8x8xf32>
    %169 = vector.shape_cast %168 : vector<8x8xf32> to vector<8x8x1xf32>
    %170 = vector.broadcast %169 : vector<8x8x1xf32> to vector<8x8x8xf32>
    %171 = arith.subf %167, %170 : vector<8x8x8xf32>
    %172 = math.exp %171 : vector<8x8x8xf32>
    %cst_43 = arith.constant dense<0.000000e+00> : vector<8x8xf32>
    %173 = vector.multi_reduction <add>, %172, %cst_43 [2] : vector<8x8x8xf32> to vector<8x8xf32>
    %174 = vector.shape_cast %173 : vector<8x8xf32> to vector<8x8x1xf32>
    %175 = vector.broadcast %174 : vector<8x8x1xf32> to vector<8x8x8xf32>
    %176 = arith.divf %172, %175 : vector<8x8x8xf32>
    "tpu.trace_start"() <{level = 10 : i32, message = "zqk,zke->zqe"}> : () -> ()
    %cst_44 = arith.constant dense<0.000000e+00> : vector<8x8x8xf32>
    %177 = tpu.matmul %176, %164, %cst_44 {dimension_numbers = #tpu.dot_dimension_numbers<[2], [1], [1], [2], [0, 0, 0, 1, 1, 2], [0], [0]>} : vector<8x8x8xf32>, vector<8x8x8xf32>, vector<8x8x8xf32> -> vector<8x8x8xf32>
    "tpu.trace_stop"() : () -> ()
    %178 = vector.extract_strided_slice %177 {offsets = [0, 0, 0], sizes = [2, 8, 8], strides = [1, 1, 1]} : vector<8x8x8xf32> to vector<2x8x8xf32>
    %179 = vector.shape_cast %178 : vector<2x8x8xf32> to vector<16x8xf32>
    %180 = vector.extract_strided_slice %177 {offsets = [2, 0, 0], sizes = [2, 8, 8], strides = [1, 1, 1]} : vector<8x8x8xf32> to vector<2x8x8xf32>
    %181 = vector.shape_cast %180 : vector<2x8x8xf32> to vector<16x8xf32>
    %182 = vector.extract_strided_slice %177 {offsets = [4, 0, 0], sizes = [2, 8, 8], strides = [1, 1, 1]} : vector<8x8x8xf32> to vector<2x8x8xf32>
    %183 = vector.shape_cast %182 : vector<2x8x8xf32> to vector<16x8xf32>
    %184 = vector.extract_strided_slice %177 {offsets = [6, 0, 0], sizes = [2, 8, 8], strides = [1, 1, 1]} : vector<8x8x8xf32> to vector<2x8x8xf32>
    %185 = vector.shape_cast %184 : vector<2x8x8xf32> to vector<16x8xf32>
    %186 = tpu.concatenate %179, %181, %183, %185 in 1 : vector<16x8xf32>, vector<16x8xf32>, vector<16x8xf32>, vector<16x8xf32> -> vector<16x32xf32>
    %cst_45 = arith.constant dense<0.000000e+00> : vector<16x32xf32>
    %187 = tpu.matmul %186, %130, %cst_45 {dimension_numbers = #tpu.dot_dimension_numbers<[1], [0], [0], [1], [0, 0, 1, 1], [], []>} : vector<16x32xf32>, vector<32x32xf32>, vector<16x32xf32> -> vector<16x32xf32>
    %188 = vector.extract_strided_slice %131 {offsets = [0, 0], sizes = [1, 32], strides = [1, 1]} : vector<6x32xf32> to vector<1x32xf32>
    %189 = vector.broadcast %188 : vector<1x32xf32> to vector<16x32xf32>
    %190 = arith.addf %187, %189 : vector<16x32xf32>
    %191 = arith.addf %127, %190 : vector<16x32xf32>
    %192 = vector.extract_strided_slice %131 {offsets = [1, 0], sizes = [1, 32], strides = [1, 1]} : vector<6x32xf32> to vector<1x32xf32>
    %193 = vector.extract_strided_slice %131 {offsets = [2, 0], sizes = [1, 32], strides = [1, 1]} : vector<6x32xf32> to vector<1x32xf32>
    %cst_46 = arith.constant dense<0.000000e+00> : vector<16xf32>
    %194 = vector.multi_reduction <add>, %191, %cst_46 [1] : vector<16x32xf32> to vector<16xf32>
    %195 = vector.shape_cast %194 : vector<16xf32> to vector<16x1xf32>
    %cst_47 = arith.constant 3.200000e+01 : f32
    %196 = vector.broadcast %cst_47 : f32 to vector<16x1xf32>
    %197 = arith.divf %195, %196 : vector<16x1xf32>
    %198 = vector.broadcast %197 : vector<16x1xf32> to vector<16x32xf32>
    %199 = arith.subf %191, %198 : vector<16x32xf32>
    %200 = arith.mulf %199, %199 : vector<16x32xf32>
    %cst_48 = arith.constant dense<0.000000e+00> : vector<16xf32>
    %201 = vector.multi_reduction <add>, %200, %cst_48 [1] : vector<16x32xf32> to vector<16xf32>
    %202 = vector.shape_cast %201 : vector<16xf32> to vector<16x1xf32>
    %cst_49 = arith.constant 3.200000e+01 : f32
    %203 = vector.broadcast %cst_49 : f32 to vector<16x1xf32>
    %204 = arith.divf %202, %203 : vector<16x1xf32>
    %205 = vector.broadcast %197 : vector<16x1xf32> to vector<16x32xf32>
    %206 = arith.subf %191, %205 : vector<16x32xf32>
    %cst_50 = arith.constant 9.99999974E-6 : f32
    %207 = vector.broadcast %cst_50 : f32 to vector<16x1xf32>
    %208 = arith.addf %204, %207 : vector<16x1xf32>
    %209 = math.rsqrt %208 : vector<16x1xf32>
    %210 = vector.broadcast %209 : vector<16x1xf32> to vector<16x32xf32>
    %211 = arith.mulf %206, %210 : vector<16x32xf32>
    %212 = vector.broadcast %192 : vector<1x32xf32> to vector<16x32xf32>
    %213 = arith.mulf %211, %212 : vector<16x32xf32>
    %214 = vector.broadcast %193 : vector<1x32xf32> to vector<16x32xf32>
    %215 = arith.addf %213, %214 : vector<16x32xf32>
    %cst_51 = arith.constant dense<0.000000e+00> : vector<16x64xf32>
    %216 = tpu.matmul %215, %132, %cst_51 {dimension_numbers = #tpu.dot_dimension_numbers<[1], [0], [0], [1], [0, 0, 1, 1], [], []>} : vector<16x32xf32>, vector<32x64xf32>, vector<16x64xf32> -> vector<16x64xf32>
    %217 = vector.broadcast %133 : vector<1x64xf32> to vector<16x64xf32>
    %218 = arith.addf %216, %217 : vector<16x64xf32>
    %cst_52 = arith.constant 0.000000e+00 : f32
    %219 = vector.broadcast %cst_52 : f32 to vector<16x64xf32>
    %220 = arith.maximumf %218, %219 : vector<16x64xf32>
    %cst_53 = arith.constant dense<0.000000e+00> : vector<16x32xf32>
    %221 = tpu.matmul %220, %134, %cst_53 {dimension_numbers = #tpu.dot_dimension_numbers<[1], [0], [0], [1], [0, 0, 1, 1], [], []>} : vector<16x64xf32>, vector<64x32xf32>, vector<16x32xf32> -> vector<16x32xf32>
    %222 = vector.extract_strided_slice %131 {offsets = [5, 0], sizes = [1, 32], strides = [1, 1]} : vector<6x32xf32> to vector<1x32xf32>
    %223 = vector.broadcast %222 : vector<1x32xf32> to vector<16x32xf32>
    %224 = arith.addf %221, %223 : vector<16x32xf32>
    %225 = arith.addf %215, %224 : vector<16x32xf32>
    %226 = vector.extract_strided_slice %131 {offsets = [3, 0], sizes = [1, 32], strides = [1, 1]} : vector<6x32xf32> to vector<1x32xf32>
    %227 = vector.extract_strided_slice %131 {offsets = [4, 0], sizes = [1, 32], strides = [1, 1]} : vector<6x32xf32> to vector<1x32xf32>
    %cst_54 = arith.constant dense<0.000000e+00> : vector<16xf32>
    %228 = vector.multi_reduction <add>, %225, %cst_54 [1] : vector<16x32xf32> to vector<16xf32>
    %229 = vector.shape_cast %228 : vector<16xf32> to vector<16x1xf32>
    %cst_55 = arith.constant 3.200000e+01 : f32
    %230 = vector.broadcast %cst_55 : f32 to vector<16x1xf32>
    %231 = arith.divf %229, %230 : vector<16x1xf32>
    %232 = vector.broadcast %231 : vector<16x1xf32> to vector<16x32xf32>
    %233 = arith.subf %225, %232 : vector<16x32xf32>
    %234 = arith.mulf %233, %233 : vector<16x32xf32>
    %cst_56 = arith.constant dense<0.000000e+00> : vector<16xf32>
    %235 = vector.multi_reduction <add>, %234, %cst_56 [1] : vector<16x32xf32> to vector<16xf32>
    %236 = vector.shape_cast %235 : vector<16xf32> to vector<16x1xf32>
    %cst_57 = arith.constant 3.200000e+01 : f32
    %237 = vector.broadcast %cst_57 : f32 to vector<16x1xf32>
    %238 = arith.divf %236, %237 : vector<16x1xf32>
    %239 = vector.broadcast %231 : vector<16x1xf32> to vector<16x32xf32>
    %240 = arith.subf %225, %239 : vector<16x32xf32>
    %cst_58 = arith.constant 9.99999974E-6 : f32
    %241 = vector.broadcast %cst_58 : f32 to vector<16x1xf32>
    %242 = arith.addf %238, %241 : vector<16x1xf32>
    %243 = math.rsqrt %242 : vector<16x1xf32>
    %244 = vector.broadcast %243 : vector<16x1xf32> to vector<16x32xf32>
    %245 = arith.mulf %240, %244 : vector<16x32xf32>
    %246 = vector.broadcast %226 : vector<1x32xf32> to vector<16x32xf32>
    %247 = arith.mulf %245, %246 : vector<16x32xf32>
    %248 = vector.broadcast %227 : vector<1x32xf32> to vector<16x32xf32>
    %249 = arith.addf %247, %248 : vector<16x32xf32>
    %250 = vector.extract_strided_slice %249 {offsets = [7, 0], sizes = [1, 32], strides = [1, 1]} : vector<16x32xf32> to vector<1x32xf32>
    %251 = vector.extract_strided_slice %249 {offsets = [15, 0], sizes = [1, 32], strides = [1, 1]} : vector<16x32xf32> to vector<1x32xf32>
    %252 = tpu.concatenate %250, %251 in 0 : vector<1x32xf32>, vector<1x32xf32> -> vector<2x32xf32>
    %c24 = arith.constant 24 : index
    %c0_59 = arith.constant 0 : index
    %253 = vector.load %arg1[%c24, %c0_59] : memref<432x96xf32, #tpu.memory_space<vmem>>, vector<32x3xf32>
    %c56 = arith.constant 56 : index
    %c0_60 = arith.constant 0 : index
    %254 = vector.load %arg1[%c56, %c0_60] : memref<432x96xf32, #tpu.memory_space<vmem>>, vector<1x3xf32>
    %cst_61 = arith.constant dense<0.000000e+00> : vector<2x3xf32>
    %255 = tpu.matmul %252, %253, %cst_61 {dimension_numbers = #tpu.dot_dimension_numbers<[1], [0], [0], [1], [0, 0, 1, 1], [], []>} : vector<2x32xf32>, vector<32x3xf32>, vector<2x3xf32> -> vector<2x3xf32>
    %256 = vector.broadcast %254 : vector<1x3xf32> to vector<2x3xf32>
    %257 = arith.addf %255, %256 : vector<2x3xf32>
    %c0_62 = arith.constant 0 : index
    %c0_63 = arith.constant 0 : index
    %258 = vector.load %arg2[%c0_62, %c0_63] : memref<2x3xf32, #tpu.memory_space<vmem>>, vector<2x3xf32>
    tpu.vector_store %arg2[%c0_62, %c0_63], %257 {strides = array<i32>} : memref<2x3xf32, #tpu.memory_space<vmem>>, vector<2x3xf32>,
    return
  }
}

</mosaic_0001>

<llo_original>
// kernel: tpu_custom_call.1
$region0: #{tpu_custom_call.1}
  #allocation0 [shape = 'u32[]', space=smem, size = 0x4, offset = 0x4, fixed_abs, tag = 'smem constant byte address 0x4 - core index']
  #allocation1 [shape = 'u32[72,128]{1,0:T(1,128)}', space=vmem, size = 0x9000, scoped, tag = 'internal scratch']
  %s0 = inlined_call_operand.vmem [shape: f32[2,8,4], index: 0, kind: input, shape index: {}]
  %s1 = inlined_call_operand.vmem [shape: f32[432,96], index: 1, kind: input, shape index: {}]
  %s2 = inlined_call_operand.hbm [shape: f32[2,3], index: 2, kind: output, shape index: {}]
  %s3 = sld [smem:[#allocation0]]
  $region18: #{tpu_custom_call.1} parent=0
    _
  %s5 = ssub.s32 1, %s3
  %s6 = scalar_select 0, %s5, %s3
  $region1: #{tpu_custom_call.1} parent=0
    #allocation2 [shape = 'u8[1024]{0}', space=vmem, size = 0x400, scoped, tag = 'output window, operand 0, single buffered']
    #allocation3 [shape = 's32[1]{0}', space=sflag, size = 0x4, scoped, tag = 'scoped memory for tpu_custom_call.1']
    %7 = vsyncpa [#allocation3], 0
    // Predicated region
    $region2: #{tpu_custom_call.1} parent=1 // pred_check
      _
    $region3: #{tpu_custom_call.1} parent=1 // pred_check_branch
      %9 = sbr.rel (0) target = $region5
    $region4: #{tpu_custom_call.1} parent=1 // pred_region
      _
    $region5: #{tpu_custom_call.1} parent=1 // pred_fallthru
      _
    // Predicated region
    $region6: #{tpu_custom_call.1} parent=1 // pred_check
      _
    $region7: #{tpu_custom_call.1} parent=1 // pred_check_branch
      %11 = sbr.rel (0) target = $region9
    $region8: #{tpu_custom_call.1} parent=1 // pred_region
      _
    $region9: #{tpu_custom_call.1} parent=1 // pred_fallthru
      _
    %v12 = vld [vmem:[%s1] sm:$0xf]
    %v13 = vld [vmem:[%s0] sm:$0xff]
    %v14 = vld [vmem:[%s0 + $0x8] sm:$0xff]
    %v15 = vld [vmem:[%s1 + $0x8] sm:$0xff]
    %v16 = vld [vmem:[%s1 + $0x10] sm:$0xff]
    %vm17 = vcmask 31744
    %v19 = vsel %vm17, %v13, 0
    %v22 = vsel %vm17, %v14, 0
    %vm24 = vcmask 1043456
    %v26 = vsel %vm24, %v12, 0
    %28 = vmatpush.msra.mxu0 0.0
    %29 = vmatpush.msra.mxu0 0.0
    %30 = vmatpush.msra.mxu0 0.0
    %31 = vmatpush.msra.mxu0 0.0
    %32 = vmatpush.msra.mxu0 0.0
    %33 = vmatpush.msra.mxu0 0.0
    %34 = vmatpush.msra.mxu0 0.0
    %35 = vmatpush.msra.mxu0 0.0
    %36 = vmatpush.msra.mxu0 0.0
    %37 = vmatpush.msra.mxu0 0.0
    %38 = vmatpush.msra.mxu0 0.0
    %39 = vmatpush.msra.mxu0 0.0
    %40 = vmatpush.msra.mxu0 0.0
    %41 = vmatpush.msra.mxu0 0.0
    %42 = vmatpush.msra.mxu0 0.0
    %43 = vmatpush.msra.mxu0 %v26
    %44 = vmatmul.f32.gmra.mxu0 %v19
    %v45 = vpop.f32.mrf.mxu0
    %v46 = vadd.f32 %v15, %v45
    %47 = vmatmul.f32.gmra.mxu0 %v22
    %v48 = vpop.f32.mrf.mxu0
    %v49 = vadd.f32 %v16, %v48
    %50 = vdwg.mxu0
    %v51 = vld [vmem:[%s1 + $0x40] sm:$0xff]
    %v52 = vld [vmem:[%s1 + $0x48] sm:$0xff]
    %v53 = vld [vmem:[%s1 + $0x50] sm:$0xff]
    %v54 = vld [vmem:[%s1 + $0x58] sm:$0xff]
    %v55 = vld [vmem:[%s1 + $0x60] sm:$0x1]
    %v56 = vld [vmem:[%s1 + $0x68] sm:$0xff]
    %v57 = vld [vmem:[%s1 + $0x70] sm:$0xff]
    %v58 = vld [vmem:[%s1 + $0x78] sm:$0xff]
    %v59 = vld [vmem:[%s1 + $0x80] sm:$0xff]
    %v60 = vld [vmem:[%s1 + $0x88] sm:$0x3f]
    %v61 = vld [vmem:[%s1 + $0x90] sm:$0xff]
    %v62 = vld [vmem:[%s1 + $0x98] sm:$0xff]
    %v63 = vld [vmem:[%s1 + $0xa0] sm:$0xff]
    %v64 = vld [vmem:[%s1 + $0xa8] sm:$0xff]
    %v65 = vld [vmem:[%s1 + $0xb0] sm:$0x1]
    %v66 = vld [vmem:[%s1 + $0xb8] sm:$0xff]
    %v67 = vld [vmem:[%s1 + $0xc0] sm:$0xff]
    %v68 = vld [vmem:[%s1 + $0xc8] sm:$0xff]
    %v69 = vld [vmem:[%s1 + $0xd0] sm:$0xff]
    %v70 = vld [vmem:[%s1 + $0xd8] sm:$0xff]
    %v71 = vld [vmem:[%s1 + $0xe0] sm:$0xff]
    %v72 = vld [vmem:[%s1 + $0xe8] sm:$0xff]
    %v73 = vld [vmem:[%s1 + $0xf0] sm:$0xff]
    %v74 = vperm.slane %v55, 0
    %vm75 = vcmask 261120
    %v77 = vsel %vm75, %v46, 0
    %v80 = vsel %vm75, %v49, 0
    %82 = vmatpush.msra.mxu0 0.0
    %83 = vmatpush.msra.mxu0 0.0
    %84 = vmatpush.msra.mxu0 0.0
    %85 = vmatpush.msra.mxu0 0.0
    %86 = vmatpush.msra.mxu0 0.0
    %87 = vmatpush.msra.mxu0 0.0
    %88 = vmatpush.msra.mxu0 0.0
    %89 = vmatpush.msra.mxu0 0.0
    %90 = vmatpush.msra.mxu0 0.0
    %91 = vmatpush.msra.mxu0 0.0
    %92 = vmatpush.msra.mxu0 0.0
    %93 = vmatpush.msra.mxu0 0.0
    %94 = vmatpush.msra.mxu0 %v54
    %95 = vmatpush.msra.mxu0 %v53
    %96 = vmatpush.msra.mxu0 %v52
    %97 = vmatpush.msra.mxu0 %v51
    %98 = vmatmul.f32.gmra.mxu0 %v77
    %v99 = vpop.f32.mrf.mxu0
    %v100 = vadd.f32 %v74, %v99
    %101 = vmatmul.f32.gmra.mxu0 %v80
    %v102 = vpop.f32.mrf.mxu0
    %v103 = vadd.f32 %v74, %v102
    %104 = vdwg.mxu0
    %107 = vrot.lane.b32.xlu0 %v100, 120
    %v108 = vpop.permute.xlu0 %107
    %109 = vrot.lane.b32.xlu0 %v103, 120
    %v110 = vpop.permute.xlu0 %109
    %111 = vrot.lane.b32.xlu0 %v100, 112
    %v112 = vpop.permute.xlu0 %111
    %113 = vrot.lane.b32.xlu0 %v103, 112
    %v114 = vpop.permute.xlu0 %113
    %115 = vrot.lane.b32.xlu0 %v100, 104
    %v116 = vpop.permute.xlu0 %115
    %117 = vrot.lane.b32.xlu0 %v103, 104
    %v118 = vpop.permute.xlu0 %117
    %119 = vrot.lane.b32.xlu0 %v100, 96
    %v120 = vpop.permute.xlu0 %119
    %vm121 = vcmask 64512
    %v122 = vsel %vm121, %v100, 0
    %v124 = vsel %vm121, %v120, 0
    %126 = vmatpush.xpose.msra.mxu0 0.0
    %127 = vmatpush.xpose.msra.mxu0 0.0
    %128 = vmatpush.xpose.msra.mxu0 0.0
    %129 = vmatpush.xpose.msra.mxu0 0.0
    %130 = vmatpush.xpose.msra.mxu0 0.0
    %131 = vmatpush.xpose.msra.mxu0 0.0
    %132 = vmatpush.xpose.msra.mxu0 0.0
    %133 = vmatpush.xpose.msra.mxu0 0.0
    %134 = vmatpush.xpose.msra.mxu0 0.0
    %135 = vmatpush.xpose.msra.mxu0 0.0
    %136 = vmatpush.xpose.msra.mxu0 0.0
    %137 = vmatpush.xpose.msra.mxu0 0.0
    %138 = vmatpush.xpose.msra.mxu0 0.0
    %139 = vmatpush.xpose.msra.mxu0 0.0
    %140 = vmatpush.xpose.msra.mxu0 0.0
    %141 = vmatpush.xpose.msra.mxu0 %v124
    %142 = vmatmul.f32.gmra.mxu0 %v122
    %v143 = vpop.f32.mrf.mxu0
    %v144 = vadd.f32 0.0, %v143
    %145 = vdwg.mxu0
    %146 = vrot.lane.b32.xlu0 %v103, 96
    %v147 = vpop.permute.xlu0 %146
    %v148 = vsel %vm121, %v103, 0
    %v150 = vsel %vm121, %v147, 0
    %152 = vmatpush.xpose.msra.mxu0 0.0
    %153 = vmatpush.xpose.msra.mxu0 0.0
    %154 = vmatpush.xpose.msra.mxu0 0.0
    %155 = vmatpush.xpose.msra.mxu0 0.0
    %156 = vmatpush.xpose.msra.mxu0 0.0
    %157 = vmatpush.xpose.msra.mxu0 0.0
    %158 = vmatpush.xpose.msra.mxu0 0.0
    %159 = vmatpush.xpose.msra.mxu0 0.0
    %160 = vmatpush.xpose.msra.mxu0 0.0
    %161 = vmatpush.xpose.msra.mxu0 0.0
    %162 = vmatpush.xpose.msra.mxu0 0.0
    %163 = vmatpush.xpose.msra.mxu0 0.0
    %164 = vmatpush.xpose.msra.mxu0 0.0
    %165 = vmatpush.xpose.msra.mxu0 0.0
    %166 = vmatpush.xpose.msra.mxu0 0.0
    %167 = vmatpush.xpose.msra.mxu0 %v150
    %168 = vmatmul.f32.gmra.mxu0 %v148
    %v169 = vpop.f32.mrf.mxu0
    %v170 = vadd.f32 0.0, %v169
    %171 = vdwg.mxu0
    %172 = vrot.lane.b32.xlu0 %v108, 96
    %v173 = vpop.permute.xlu0 %172
    %v174 = vsel %vm121, %v108, 0
    %v176 = vsel %vm121, %v173, 0
    %178 = vmatpush.xpose.msra.mxu0 0.0
    %179 = vmatpush.xpose.msra.mxu0 0.0
    %180 = vmatpush.xpose.msra.mxu0 0.0
    %181 = vmatpush.xpose.msra.mxu0 0.0
    %182 = vmatpush.xpose.msra.mxu0 0.0
    %183 = vmatpush.xpose.msra.mxu0 0.0
    %184 = vmatpush.xpose.msra.mxu0 0.0
    %185 = vmatpush.xpose.msra.mxu0 0.0
    %186 = vmatpush.xpose.msra.mxu0 0.0
    %187 = vmatpush.xpose.msra.mxu0 0.0
    %188 = vmatpush.xpose.msra.mxu0 0.0
    %189 = vmatpush.xpose.msra.mxu0 0.0
    %190 = vmatpush.xpose.msra.mxu0 0.0
    %191 = vmatpush.xpose.msra.mxu0 0.0
    %192 = vmatpush.xpose.msra.mxu0 0.0
    %193 = vmatpush.xpose.msra.mxu0 %v176
    %194 = vmatmul.f32.gmra.mxu0 %v174
    %v195 = vpop.f32.mrf.mxu0
    %v196 = vadd.f32 0.0, %v195
    %197 = vdwg.mxu0
    %198 = vrot.lane.b32.xlu0 %v110, 96
    %v199 = vpop.permute.xlu0 %198
    %v200 = vsel %vm121, %v110, 0
    %v202 = vsel %vm121, %v199, 0
    %204 = vmatpush.xpose.msra.mxu0 0.0
    %205 = vmatpush.xpose.msra.mxu0 0.0
    %206 = vmatpush.xpose.msra.mxu0 0.0
    %207 = vmatpush.xpose.msra.mxu0 0.0
    %208 = vmatpush.xpose.msra.mxu0 0.0
    %209 = vmatpush.xpose.msra.mxu0 0.0
    %210 = vmatpush.xpose.msra.mxu0 0.0
    %211 = vmatpush.xpose.msra.mxu0 0.0
    %212 = vmatpush.xpose.msra.mxu0 0.0
    %213 = vmatpush.xpose.msra.mxu0 0.0
    %214 = vmatpush.xpose.msra.mxu0 0.0
    %215 = vmatpush.xpose.msra.mxu0 0.0
    %216 = vmatpush.xpose.msra.mxu0 0.0
    %217 = vmatpush.xpose.msra.mxu0 0.0
    %218 = vmatpush.xpose.msra.mxu0 0.0
    %219 = vmatpush.xpose.msra.mxu0 %v202
    %220 = vmatmul.f32.gmra.mxu0 %v200
    %v221 = vpop.f32.mrf.mxu0
    %v222 = vadd.f32 0.0, %v221
    %223 = vdwg.mxu0
    %224 = vrot.lane.b32.xlu0 %v112, 96
    %v225 = vpop.permute.xlu0 %224
    %v226 = vsel %vm121, %v112, 0
    %v228 = vsel %vm121, %v225, 0
    %230 = vmatpush.xpose.msra.mxu0 0.0
    %231 = vmatpush.xpose.msra.mxu0 0.0
    %232 = vmatpush.xpose.msra.mxu0 0.0
    %233 = vmatpush.xpose.msra.mxu0 0.0
    %234 = vmatpush.xpose.msra.mxu0 0.0
    %235 = vmatpush.xpose.msra.mxu0 0.0
    %236 = vmatpush.xpose.msra.mxu0 0.0
    %237 = vmatpush.xpose.msra.mxu0 0.0
    %238 = vmatpush.xpose.msra.mxu0 0.0
    %239 = vmatpush.xpose.msra.mxu0 0.0
    %240 = vmatpush.xpose.msra.mxu0 0.0
    %241 = vmatpush.xpose.msra.mxu0 0.0
    %242 = vmatpush.xpose.msra.mxu0 0.0
    %243 = vmatpush.xpose.msra.mxu0 0.0
    %244 = vmatpush.xpose.msra.mxu0 0.0
    %245 = vmatpush.xpose.msra.mxu0 %v228
    %246 = vmatmul.f32.gmra.mxu0 %v226
    %v247 = vpop.f32.mrf.mxu0
    %v248 = vadd.f32 0.0, %v247
    %249 = vdwg.mxu0
    %250 = vrot.lane.b32.xlu0 %v114, 96
    %v251 = vpop.permute.xlu0 %250
    %v252 = vsel %vm121, %v114, 0
    %v254 = vsel %vm121, %v251, 0
    %256 = vmatpush.xpose.msra.mxu0 0.0
    %257 = vmatpush.xpose.msra.mxu0 0.0
    %258 = vmatpush.xpose.msra.mxu0 0.0
    %259 = vmatpush.xpose.msra.mxu0 0.0
    %260 = vmatpush.xpose.msra.mxu0 0.0
    %261 = vmatpush.xpose.msra.mxu0 0.0
    %262 = vmatpush.xpose.msra.mxu0 0.0
    %263 = vmatpush.xpose.msra.mxu0 0.0
    %264 = vmatpush.xpose.msra.mxu0 0.0
    %265 = vmatpush.xpose.msra.mxu0 0.0
    %266 = vmatpush.xpose.msra.mxu0 0.0
    %267 = vmatpush.xpose.msra.mxu0 0.0
    %268 = vmatpush.xpose.msra.mxu0 0.0
    %269 = vmatpush.xpose.msra.mxu0 0.0
    %270 = vmatpush.xpose.msra.mxu0 0.0
    %271 = vmatpush.xpose.msra.mxu0 %v254
    %272 = vmatmul.f32.gmra.mxu0 %v252
    %v273 = vpop.f32.mrf.mxu0
    %v274 = vadd.f32 0.0, %v273
    %275 = vdwg.mxu0
    %276 = vrot.lane.b32.xlu0 %v116, 96
    %v277 = vpop.permute.xlu0 %276
    %v278 = vsel %vm121, %v116, 0
    %v280 = vsel %vm121, %v277, 0
    %282 = vmatpush.xpose.msra.mxu0 0.0
    %283 = vmatpush.xpose.msra.mxu0 0.0
    %284 = vmatpush.xpose.msra.mxu0 0.0
    %285 = vmatpush.xpose.msra.mxu0 0.0
    %286 = vmatpush.xpose.msra.mxu0 0.0
    %287 = vmatpush.xpose.msra.mxu0 0.0
    %288 = vmatpush.xpose.msra.mxu0 0.0
    %289 = vmatpush.xpose.msra.mxu0 0.0
    %290 = vmatpush.xpose.msra.mxu0 0.0
    %291 = vmatpush.xpose.msra.mxu0 0.0
    %292 = vmatpush.xpose.msra.mxu0 0.0
    %293 = vmatpush.xpose.msra.mxu0 0.0
    %294 = vmatpush.xpose.msra.mxu0 0.0
    %295 = vmatpush.xpose.msra.mxu0 0.0
    %296 = vmatpush.xpose.msra.mxu0 0.0
    %297 = vmatpush.xpose.msra.mxu0 %v280
    %298 = vmatmul.f32.gmra.mxu0 %v278
    %v299 = vpop.f32.mrf.mxu0
    %v300 = vadd.f32 0.0, %v299
    %301 = vdwg.mxu0
    %302 = vrot.lane.b32.xlu0 %v118, 96
    %v303 = vpop.permute.xlu0 %302
    %v304 = vsel %vm121, %v118, 0
    %v306 = vsel %vm121, %v303, 0
    %308 = vmatpush.xpose.msra.mxu0 0.0
    %309 = vmatpush.xpose.msra.mxu0 0.0
    %310 = vmatpush.xpose.msra.mxu0 0.0
    %311 = vmatpush.xpose.msra.mxu0 0.0
    %312 = vmatpush.xpose.msra.mxu0 0.0
    %313 = vmatpush.xpose.msra.mxu0 0.0
    %314 = vmatpush.xpose.msra.mxu0 0.0
    %315 = vmatpush.xpose.msra.mxu0 0.0
    %316 = vmatpush.xpose.msra.mxu0 0.0
    %317 = vmatpush.xpose.msra.mxu0 0.0
    %318 = vmatpush.xpose.msra.mxu0 0.0
    %319 = vmatpush.xpose.msra.mxu0 0.0
    %320 = vmatpush.xpose.msra.mxu0 0.0
    %321 = vmatpush.xpose.msra.mxu0 0.0
    %322 = vmatpush.xpose.msra.mxu0 0.0
    %323 = vmatpush.xpose.msra.mxu0 %v306
    %324 = vmatmul.f32.gmra.mxu0 %v304
    %v325 = vpop.f32.mrf.mxu0
    %v326 = vadd.f32 0.0, %v325
    %327 = vdwg.mxu0
    %v328 = vmul.f32 %v144, 0.35355338
    %v329 = vmul.f32 %v170, 0.35355338
    %v330 = vmul.f32 %v196, 0.35355338
    %v331 = vmul.f32 %v222, 0.35355338
    %v332 = vmul.f32 %v248, 0.35355338
    %v333 = vmul.f32 %v274, 0.35355338
    %v334 = vmul.f32 %v300, 0.35355338
    %v335 = vmul.f32 %v326, 0.35355338
    %v336 = vsel %vm121, %v328, -inf
    %337 = vmax.xlane.f32.xlu0 %v336
    %v338 = vpop.xlane.xlu0 %337
    %v339 = vsel %vm121, %v329, -inf
    %340 = vmax.xlane.f32.xlu0 %v339
    %v341 = vpop.xlane.xlu0 %340
    %v342 = vsel %vm121, %v330, -inf
    %343 = vmax.xlane.f32.xlu0 %v342
    %v344 = vpop.xlane.xlu0 %343
    %v345 = vsel %vm121, %v331, -inf
    %346 = vmax.xlane.f32.xlu0 %v345
    %v347 = vpop.xlane.xlu0 %346
    %v348 = vsel %vm121, %v332, -inf
    %349 = vmax.xlane.f32.xlu0 %v348
    %v350 = vpop.xlane.xlu0 %349
    %v351 = vsel %vm121, %v333, -inf
    %352 = vmax.xlane.f32.xlu0 %v351
    %v353 = vpop.xlane.xlu0 %352
    %v354 = vsel %vm121, %v334, -inf
    %355 = vmax.xlane.f32.xlu0 %v354
    %v356 = vpop.xlane.xlu0 %355
    %v357 = vsel %vm121, %v335, -inf
    %358 = vmax.xlane.f32.xlu0 %v357
    %v359 = vpop.xlane.xlu0 %358
    %v360 = vsub.f32 %v328, %v338
    %v361 = vsub.f32 %v329, %v341
    %v362 = vsub.f32 %v330, %v344
    %v363 = vsub.f32 %v331, %v347
    %v364 = vsub.f32 %v332, %v350
    %v365 = vsub.f32 %v333, %v353
    %v366 = vsub.f32 %v334, %v356
    %v367 = vsub.f32 %v335, %v359
    %v368 = vmul.f32 %v360, 1.442695
    %v369 = vpow.pop %v368
    %v370 = vmul.f32 %v361, 1.442695
    %v371 = vpow.pop %v370
    %v372 = vmul.f32 %v362, 1.442695
    %v373 = vpow.pop %v372
    %v374 = vmul.f32 %v363, 1.442695
    %v375 = vpow.pop %v374
    %v376 = vmul.f32 %v364, 1.442695
    %v377 = vpow.pop %v376
    %v378 = vmul.f32 %v365, 1.442695
    %v379 = vpow.pop %v378
    %v380 = vmul.f32 %v366, 1.442695
    %v381 = vpow.pop %v380
    %v382 = vmul.f32 %v367, 1.442695
    %v383 = vpow.pop %v382
    %v384 = vsel %vm121, %v369, 0.0
    %385 = vadd.xlane.f32.xlu0 %v384
    %v386 = vpop.xlane.xlu0 %385
    %v387 = vsel %vm121, %v371, 0.0
    %388 = vadd.xlane.f32.xlu0 %v387
    %v389 = vpop.xlane.xlu0 %388
    %v390 = vsel %vm121, %v373, 0.0
    %391 = vadd.xlane.f32.xlu0 %v390
    %v392 = vpop.xlane.xlu0 %391
    %v393 = vsel %vm121, %v375, 0.0
    %394 = vadd.xlane.f32.xlu0 %v393
    %v395 = vpop.xlane.xlu0 %394
    %v396 = vsel %vm121, %v377, 0.0
    %397 = vadd.xlane.f32.xlu0 %v396
    %v398 = vpop.xlane.xlu0 %397
    %v399 = vsel %vm121, %v379, 0.0
    %400 = vadd.xlane.f32.xlu0 %v399
    %v401 = vpop.xlane.xlu0 %400
    %v402 = vsel %vm121, %v381, 0.0
    %403 = vadd.xlane.f32.xlu0 %v402
    %v404 = vpop.xlane.xlu0 %403
    %v405 = vsel %vm121, %v383, 0.0
    %406 = vadd.xlane.f32.xlu0 %v405
    %v407 = vpop.xlane.xlu0 %406
    %v408 = vrcp.pop %v386
    %v409 = vmul.f32 %v386, %v408
    %v410 = vsub.f32 1.0, %v409
    %v411 = vmul.f32 %v408, %v410
    %v412 = vadd.f32 %v408, %v411
    %vm413 = vweird.f32 %v386
    %vm414 = vweird.f32 %v408
    %vm415 = vmor %vm413, %vm414
    %v416 = vsel %vm415, %v408, %v412
    %v417 = vand.u32 2147483647, %v386
    %vm418 = vcmp.eq.f32.partialorder %v417, 8.507059e+37
    %v419 = vand.u32 %v386, 2147483648
    %v420 = vor.u32 1.1754944e-38, %v419
    %v421 = vsel %vm418, %v420, %v416
    %v422 = vmul.f32 %v369, %v421
    %v423 = vrcp.pop %v389
    %v424 = vmul.f32 %v389, %v423
    %v425 = vsub.f32 1.0, %v424
    %v426 = vmul.f32 %v423, %v425
    %v427 = vadd.f32 %v423, %v426
    %vm428 = vweird.f32 %v389
    %vm429 = vweird.f32 %v423
    %vm430 = vmor %vm428, %vm429
    %v431 = vsel %vm430, %v423, %v427
    %v432 = vand.u32 2147483647, %v389
    %vm433 = vcmp.eq.f32.partialorder %v432, 8.507059e+37
    %v434 = vand.u32 %v389, 2147483648
    %v435 = vor.u32 1.1754944e-38, %v434
    %v436 = vsel %vm433, %v435, %v431
    %v437 = vmul.f32 %v371, %v436
    %v438 = vrcp.pop %v392
    %v439 = vmul.f32 %v392, %v438
    %v440 = vsub.f32 1.0, %v439
    %v441 = vmul.f32 %v438, %v440
    %v442 = vadd.f32 %v438, %v441
    %vm443 = vweird.f32 %v392
    %vm444 = vweird.f32 %v438
    %vm445 = vmor %vm443, %vm444
    %v446 = vsel %vm445, %v438, %v442
    %v447 = vand.u32 2147483647, %v392
    %vm448 = vcmp.eq.f32.partialorder %v447, 8.507059e+37
    %v449 = vand.u32 %v392, 2147483648
    %v450 = vor.u32 1.1754944e-38, %v449
    %v451 = vsel %vm448, %v450, %v446
    %v452 = vmul.f32 %v373, %v451
    %v453 = vrcp.pop %v395
    %v454 = vmul.f32 %v395, %v453
    %v455 = vsub.f32 1.0, %v454
    %v456 = vmul.f32 %v453, %v455
    %v457 = vadd.f32 %v453, %v456
    %vm458 = vweird.f32 %v395
    %vm459 = vweird.f32 %v453
    %vm460 = vmor %vm458, %vm459
    %v461 = vsel %vm460, %v453, %v457
    %v462 = vand.u32 2147483647, %v395
    %vm463 = vcmp.eq.f32.partialorder %v462, 8.507059e+37
    %v464 = vand.u32 %v395, 2147483648
    %v465 = vor.u32 1.1754944e-38, %v464
    %v466 = vsel %vm463, %v465, %v461
    %v467 = vmul.f32 %v375, %v466
    %v468 = vrcp.pop %v398
    %v469 = vmul.f32 %v398, %v468
    %v470 = vsub.f32 1.0, %v469
    %v471 = vmul.f32 %v468, %v470
    %v472 = vadd.f32 %v468, %v471
    %vm473 = vweird.f32 %v398
    %vm474 = vweird.f32 %v468
    %vm475 = vmor %vm473, %vm474
    %v476 = vsel %vm475, %v468, %v472
    %v477 = vand.u32 2147483647, %v398
    %vm478 = vcmp.eq.f32.partialorder %v477, 8.507059e+37
    %v479 = vand.u32 %v398, 2147483648
    %v480 = vor.u32 1.1754944e-38, %v479
    %v481 = vsel %vm478, %v480, %v476
    %v482 = vmul.f32 %v377, %v481
    %v483 = vrcp.pop %v401
    %v484 = vmul.f32 %v401, %v483
    %v485 = vsub.f32 1.0, %v484
    %v486 = vmul.f32 %v483, %v485
    %v487 = vadd.f32 %v483, %v486
    %vm488 = vweird.f32 %v401
    %vm489 = vweird.f32 %v483
    %vm490 = vmor %vm488, %vm489
    %v491 = vsel %vm490, %v483, %v487
    %v492 = vand.u32 2147483647, %v401
    %vm493 = vcmp.eq.f32.partialorder %v492, 8.507059e+37
    %v494 = vand.u32 %v401, 2147483648
    %v495 = vor.u32 1.1754944e-38, %v494
    %v496 = vsel %vm493, %v495, %v491
    %v497 = vmul.f32 %v379, %v496
    %v498 = vrcp.pop %v404
    %v499 = vmul.f32 %v404, %v498
    %v500 = vsub.f32 1.0, %v499
    %v501 = vmul.f32 %v498, %v500
    %v502 = vadd.f32 %v498, %v501
    %vm503 = vweird.f32 %v404
    %vm504 = vweird.f32 %v498
    %vm505 = vmor %vm503, %vm504
    %v506 = vsel %vm505, %v498, %v502
    %v507 = vand.u32 2147483647, %v404
    %vm508 = vcmp.eq.f32.partialorder %v507, 8.507059e+37
    %v509 = vand.u32 %v404, 2147483648
    %v510 = vor.u32 1.1754944e-38, %v509
    %v511 = vsel %vm508, %v510, %v506
    %v512 = vmul.f32 %v381, %v511
    %v513 = vrcp.pop %v407
    %v514 = vmul.f32 %v407, %v513
    %v515 = vsub.f32 1.0, %v514
    %v516 = vmul.f32 %v513, %v515
    %v517 = vadd.f32 %v513, %v516
    %vm518 = vweird.f32 %v407
    %vm519 = vweird.f32 %v513
    %vm520 = vmor %vm518, %vm519
    %v521 = vsel %vm520, %v513, %v517
    %v522 = vand.u32 2147483647, %v407
    %vm523 = vcmp.eq.f32.partialorder %v522, 8.507059e+37
    %v524 = vand.u32 %v407, 2147483648
    %v525 = vor.u32 1.1754944e-38, %v524
    %v526 = vsel %vm523, %v525, %v521
    %v527 = vmul.f32 %v383, %v526
    %528 = vrot.lane.b32.xlu0 %v100, 64
    %v529 = vpop.permute.xlu0 %528
    %v532 = vsel %vm121, %v422, 0
    %534 = vmatpush.msra.mxu0 0.0
    %535 = vmatpush.msra.mxu0 0.0
    %536 = vmatpush.msra.mxu0 0.0
    %537 = vmatpush.msra.mxu0 0.0
    %538 = vmatpush.msra.mxu0 0.0
    %539 = vmatpush.msra.mxu0 0.0
    %540 = vmatpush.msra.mxu0 0.0
    %541 = vmatpush.msra.mxu0 0.0
    %542 = vmatpush.msra.mxu0 0.0
    %543 = vmatpush.msra.mxu0 0.0
    %544 = vmatpush.msra.mxu0 0.0
    %545 = vmatpush.msra.mxu0 0.0
    %546 = vmatpush.msra.mxu0 0.0
    %547 = vmatpush.msra.mxu0 0.0
    %548 = vmatpush.msra.mxu0 0.0
    %549 = vmatpush.msra.mxu0 %v529
    %550 = vmatmul.f32.gmra.mxu0 %v532
    %v551 = vpop.f32.mrf.mxu0
    %v552 = vadd.f32 0.0, %v551
    %553 = vdwg.mxu0
    %554 = vrot.lane.b32.xlu0 %v103, 64
    %v555 = vpop.permute.xlu0 %554
    %v558 = vsel %vm121, %v437, 0
    %560 = vmatpush.msra.mxu0 0.0
    %561 = vmatpush.msra.mxu0 0.0
    %562 = vmatpush.msra.mxu0 0.0
    %563 = vmatpush.msra.mxu0 0.0
    %564 = vmatpush.msra.mxu0 0.0
    %565 = vmatpush.msra.mxu0 0.0
    %566 = vmatpush.msra.mxu0 0.0
    %567 = vmatpush.msra.mxu0 0.0
    %568 = vmatpush.msra.mxu0 0.0
    %569 = vmatpush.msra.mxu0 0.0
    %570 = vmatpush.msra.mxu0 0.0
    %571 = vmatpush.msra.mxu0 0.0
    %572 = vmatpush.msra.mxu0 0.0
    %573 = vmatpush.msra.mxu0 0.0
    %574 = vmatpush.msra.mxu0 0.0
    %575 = vmatpush.msra.mxu0 %v555
    %576 = vmatmul.f32.gmra.mxu0 %v558
    %v577 = vpop.f32.mrf.mxu0
    %v578 = vadd.f32 0.0, %v577
    %579 = vdwg.mxu0
    %580 = vrot.lane.b32.xlu0 %v108, 64
    %v581 = vpop.permute.xlu0 %580
    %v584 = vsel %vm121, %v452, 0
    %586 = vmatpush.msra.mxu0 0.0
    %587 = vmatpush.msra.mxu0 0.0
    %588 = vmatpush.msra.mxu0 0.0
    %589 = vmatpush.msra.mxu0 0.0
    %590 = vmatpush.msra.mxu0 0.0
    %591 = vmatpush.msra.mxu0 0.0
    %592 = vmatpush.msra.mxu0 0.0
    %593 = vmatpush.msra.mxu0 0.0
    %594 = vmatpush.msra.mxu0 0.0
    %595 = vmatpush.msra.mxu0 0.0
    %596 = vmatpush.msra.mxu0 0.0
    %597 = vmatpush.msra.mxu0 0.0
    %598 = vmatpush.msra.mxu0 0.0
    %599 = vmatpush.msra.mxu0 0.0
    %600 = vmatpush.msra.mxu0 0.0
    %601 = vmatpush.msra.mxu0 %v581
    %602 = vmatmul.f32.gmra.mxu0 %v584
    %v603 = vpop.f32.mrf.mxu0
    %v604 = vadd.f32 0.0, %v603
    %605 = vdwg.mxu0
    %606 = vrot.lane.b32.xlu0 %v110, 64
    %v607 = vpop.permute.xlu0 %606
    %v610 = vsel %vm121, %v467, 0
    %612 = vmatpush.msra.mxu0 0.0
    %613 = vmatpush.msra.mxu0 0.0
    %614 = vmatpush.msra.mxu0 0.0
    %615 = vmatpush.msra.mxu0 0.0
    %616 = vmatpush.msra.mxu0 0.0
    %617 = vmatpush.msra.mxu0 0.0
    %618 = vmatpush.msra.mxu0 0.0
    %619 = vmatpush.msra.mxu0 0.0
    %620 = vmatpush.msra.mxu0 0.0
    %621 = vmatpush.msra.mxu0 0.0
    %622 = vmatpush.msra.mxu0 0.0
    %623 = vmatpush.msra.mxu0 0.0
    %624 = vmatpush.msra.mxu0 0.0
    %625 = vmatpush.msra.mxu0 0.0
    %626 = vmatpush.msra.mxu0 0.0
    %627 = vmatpush.msra.mxu0 %v607
    %628 = vmatmul.f32.gmra.mxu0 %v610
    %v629 = vpop.f32.mrf.mxu0
    %v630 = vadd.f32 0.0, %v629
    %631 = vdwg.mxu0
    %632 = vrot.lane.b32.xlu0 %v112, 64
    %v633 = vpop.permute.xlu0 %632
    %v636 = vsel %vm121, %v482, 0
    %638 = vmatpush.msra.mxu0 0.0
    %639 = vmatpush.msra.mxu0 0.0
    %640 = vmatpush.msra.mxu0 0.0
    %641 = vmatpush.msra.mxu0 0.0
    %642 = vmatpush.msra.mxu0 0.0
    %643 = vmatpush.msra.mxu0 0.0
    %644 = vmatpush.msra.mxu0 0.0
    %645 = vmatpush.msra.mxu0 0.0
    %646 = vmatpush.msra.mxu0 0.0
    %647 = vmatpush.msra.mxu0 0.0
    %648 = vmatpush.msra.mxu0 0.0
    %649 = vmatpush.msra.mxu0 0.0
    %650 = vmatpush.msra.mxu0 0.0
    %651 = vmatpush.msra.mxu0 0.0
    %652 = vmatpush.msra.mxu0 0.0
    %653 = vmatpush.msra.mxu0 %v633
    %654 = vmatmul.f32.gmra.mxu0 %v636
    %v655 = vpop.f32.mrf.mxu0
    %v656 = vadd.f32 0.0, %v655
    %657 = vdwg.mxu0
    %658 = vrot.lane.b32.xlu0 %v114, 64
    %v659 = vpop.permute.xlu0 %658
    %v662 = vsel %vm121, %v497, 0
    %664 = vmatpush.msra.mxu0 0.0
    %665 = vmatpush.msra.mxu0 0.0
    %666 = vmatpush.msra.mxu0 0.0
    %667 = vmatpush.msra.mxu0 0.0
    %668 = vmatpush.msra.mxu0 0.0
    %669 = vmatpush.msra.mxu0 0.0
    %670 = vmatpush.msra.mxu0 0.0
    %671 = vmatpush.msra.mxu0 0.0
    %672 = vmatpush.msra.mxu0 0.0
    %673 = vmatpush.msra.mxu0 0.0
    %674 = vmatpush.msra.mxu0 0.0
    %675 = vmatpush.msra.mxu0 0.0
    %676 = vmatpush.msra.mxu0 0.0
    %677 = vmatpush.msra.mxu0 0.0
    %678 = vmatpush.msra.mxu0 0.0
    %679 = vmatpush.msra.mxu0 %v659
    %680 = vmatmul.f32.gmra.mxu0 %v662
    %v681 = vpop.f32.mrf.mxu0
    %v682 = vadd.f32 0.0, %v681
    %683 = vdwg.mxu0
    %684 = vrot.lane.b32.xlu0 %v116, 64
    %v685 = vpop.permute.xlu0 %684
    %v688 = vsel %vm121, %v512, 0
    %690 = vmatpush.msra.mxu0 0.0
    %691 = vmatpush.msra.mxu0 0.0
    %692 = vmatpush.msra.mxu0 0.0
    %693 = vmatpush.msra.mxu0 0.0
    %694 = vmatpush.msra.mxu0 0.0
    %695 = vmatpush.msra.mxu0 0.0
    %696 = vmatpush.msra.mxu0 0.0
    %697 = vmatpush.msra.mxu0 0.0
    %698 = vmatpush.msra.mxu0 0.0
    %699 = vmatpush.msra.mxu0 0.0
    %700 = vmatpush.msra.mxu0 0.0
    %701 = vmatpush.msra.mxu0 0.0
    %702 = vmatpush.msra.mxu0 0.0
    %703 = vmatpush.msra.mxu0 0.0
    %704 = vmatpush.msra.mxu0 0.0
    %705 = vmatpush.msra.mxu0 %v685
    %706 = vmatmul.f32.gmra.mxu0 %v688
    %v707 = vpop.f32.mrf.mxu0
    %v708 = vadd.f32 0.0, %v707
    %709 = vdwg.mxu0
    %710 = vrot.lane.b32.xlu0 %v118, 64
    %v711 = vpop.permute.xlu0 %710
    %v714 = vsel %vm121, %v527, 0
    %716 = vmatpush.msra.mxu0 0.0
    %717 = vmatpush.msra.mxu0 0.0
    %718 = vmatpush.msra.mxu0 0.0
    %719 = vmatpush.msra.mxu0 0.0
    %720 = vmatpush.msra.mxu0 0.0
    %721 = vmatpush.msra.mxu0 0.0
    %722 = vmatpush.msra.mxu0 0.0
    %723 = vmatpush.msra.mxu0 0.0
    %724 = vmatpush.msra.mxu0 0.0
    %725 = vmatpush.msra.mxu0 0.0
    %726 = vmatpush.msra.mxu0 0.0
    %727 = vmatpush.msra.mxu0 0.0
    %728 = vmatpush.msra.mxu0 0.0
    %729 = vmatpush.msra.mxu0 0.0
    %730 = vmatpush.msra.mxu0 0.0
    %731 = vmatpush.msra.mxu0 %v711
    %732 = vmatmul.f32.gmra.mxu0 %v714
    %v733 = vpop.f32.mrf.mxu0
    %v734 = vadd.f32 0.0, %v733
    %735 = vdwg.mxu0
    %738 = vrot.lane.b32.xlu0 %v604, 8
    %v739 = vpop.permute.xlu0 %738
    %740 = vrot.lane.b32.xlu0 %v630, 8
    %v741 = vpop.permute.xlu0 %740
    %746 = vrot.lane.b32.xlu0 %v656, 16
    %v747 = vpop.permute.xlu0 %746
    %748 = vrot.lane.b32.xlu0 %v682, 16
    %v749 = vpop.permute.xlu0 %748
    %754 = vrot.lane.b32.xlu0 %v708, 24
    %v755 = vpop.permute.xlu0 %754
    %756 = vrot.lane.b32.xlu0 %v734, 24
    %v757 = vpop.permute.xlu0 %756
    %v760 = vsel %vm121, %v552, %v739
    %v761 = vsel %vm121, %v578, %v741
    %vm762 = vcmask 130048
    %v763 = vsel %vm762, %v760, %v747
    %v764 = vsel %vm762, %v761, %v749
    %vm765 = vcmask 195584
    %v766 = vsel %vm765, %v763, %v755
    %v767 = vsel %vm765, %v764, %v757
    %v768 = vperm.slane %v60, 0
    %v770 = vsel %vm75, %v766, 0
    %v773 = vsel %vm75, %v767, 0
    %775 = vmatpush.msra.mxu0 0.0
    %776 = vmatpush.msra.mxu0 0.0
    %777 = vmatpush.msra.mxu0 0.0
    %778 = vmatpush.msra.mxu0 0.0
    %779 = vmatpush.msra.mxu0 0.0
    %780 = vmatpush.msra.mxu0 0.0
    %781 = vmatpush.msra.mxu0 0.0
    %782 = vmatpush.msra.mxu0 0.0
    %783 = vmatpush.msra.mxu0 0.0
    %784 = vmatpush.msra.mxu0 0.0
    %785 = vmatpush.msra.mxu0 0.0
    %786 = vmatpush.msra.mxu0 0.0
    %787 = vmatpush.msra.mxu0 %v59
    %788 = vmatpush.msra.mxu0 %v58
    %789 = vmatpush.msra.mxu0 %v57
    %790 = vmatpush.msra.mxu0 %v56
    %791 = vmatmul.f32.gmra.mxu0 %v770
    %v792 = vpop.f32.mrf.mxu0
    %v793 = vadd.f32 %v768, %v792
    %794 = vmatmul.f32.gmra.mxu0 %v773
    %v795 = vpop.f32.mrf.mxu0
    %v796 = vadd.f32 %v768, %v795
    %797 = vdwg.mxu0
    %v798 = vadd.f32 %v46, %v793
    %v799 = vadd.f32 %v49, %v796
    %v800 = vsel %vm75, %v798, 0.0
    %801 = vadd.xlane.f32.xlu0 %v800
    %v802 = vpop.xlane.xlu0 %801
    %v803 = vsel %vm75, %v799, 0.0
    %804 = vadd.xlane.f32.xlu0 %v803
    %v805 = vpop.xlane.xlu0 %804
    %v806 = vrcp.pop 32.0
    %v807 = vmul.f32 32.0, %v806
    %v808 = vsub.f32 1.0, %v807
    %v809 = vmul.f32 %v806, %v808
    %v810 = vadd.f32 %v806, %v809
    %vm811 = vweird.f32 %v806
    %v812 = vsel %vm811, %v806, %v810
    %v813 = vmul.f32 %v802, %v812
    %v814 = vmul.f32 %v805, %v812
    %v815 = vsub.f32 %v798, %v813
    %v816 = vsub.f32 %v799, %v814
    %v817 = vmul.f32 %v815, %v815
    %v818 = vmul.f32 %v816, %v816
    %v819 = vsel %vm75, %v817, 0.0
    %820 = vadd.xlane.f32.xlu0 %v819
    %v821 = vpop.xlane.xlu0 %820
    %v822 = vsel %vm75, %v818, 0.0
    %823 = vadd.xlane.f32.xlu0 %v822
    %v824 = vpop.xlane.xlu0 %823
    %v825 = vmul.f32 %v821, %v812
    %v826 = vmul.f32 %v824, %v812
    %v827 = vadd.f32 %v825, 1e-05
    %v828 = vadd.f32 %v826, 1e-05
    %v829 = vrsqrt.pop %v827
    %v830 = vmul.f32 %v829, %v827
    %v831 = vmul.f32 %v830, %v829
    %v832 = vmul.f32 0.5, %v831
    %v833 = vsub.f32 1.5, %v832
    %v834 = vmul.f32 %v829, %v833
    %vm835 = vweird.f32 %v827
    %vm836 = vweird.f32 %v829
    %vm837 = vmor %vm835, %vm836
    %v838 = vsel %vm837, %v829, %v834
    %v839 = vrsqrt.pop %v828
    %v840 = vmul.f32 %v839, %v828
    %v841 = vmul.f32 %v840, %v839
    %v842 = vmul.f32 0.5, %v841
    %v843 = vsub.f32 1.5, %v842
    %v844 = vmul.f32 %v839, %v843
    %vm845 = vweird.f32 %v828
    %vm846 = vweird.f32 %v839
    %vm847 = vmor %vm845, %vm846
    %v848 = vsel %vm847, %v839, %v844
    %v849 = vmul.f32 %v815, %v838
    %v850 = vmul.f32 %v816, %v848
    %v851 = vperm.slane %v60, 1
    %v852 = vmul.f32 %v849, %v851
    %v853 = vmul.f32 %v850, %v851
    %v854 = vperm.slane %v60, 2
    %v855 = vadd.f32 %v852, %v854
    %v856 = vadd.f32 %v853, %v854
    %v857 = vperm.slane %v65, 0
    %v859 = vsel %vm75, %v855, 0
    %v862 = vsel %vm75, %v856, 0
    %864 = vmatpush.msra.mxu0 0.0
    %865 = vmatpush.msra.mxu0 0.0
    %866 = vmatpush.msra.mxu0 0.0
    %867 = vmatpush.msra.mxu0 0.0
    %868 = vmatpush.msra.mxu0 0.0
    %869 = vmatpush.msra.mxu0 0.0
    %870 = vmatpush.msra.mxu0 0.0
    %871 = vmatpush.msra.mxu0 0.0
    %872 = vmatpush.msra.mxu0 0.0
    %873 = vmatpush.msra.mxu0 0.0
    %874 = vmatpush.msra.mxu0 0.0
    %875 = vmatpush.msra.mxu0 0.0
    %876 = vmatpush.msra.mxu0 %v64
    %877 = vmatpush.msra.mxu0 %v63
    %878 = vmatpush.msra.mxu0 %v62
    %879 = vmatpush.msra.mxu0 %v61
    %880 = vmatmul.f32.gmra.mxu0 %v859
    %v881 = vpop.f32.mrf.mxu0
    %v882 = vadd.f32 %v857, %v881
    %883 = vmatmul.f32.gmra.mxu0 %v862
    %v884 = vpop.f32.mrf.mxu0
    %v885 = vadd.f32 %v857, %v884
    %886 = vdwg.mxu0
    %v887 = vmax.f32 %v882, 0.0
    %v888 = vmax.f32 %v885, 0.0
    %v889 = vperm.slane %v60, 5
    %vm890 = vcmask 523264
    %v892 = vsel %vm890, %v887, 0
    %v895 = vsel %vm890, %v888, 0
    %897 = vmatpush.msra.mxu0 0.0
    %898 = vmatpush.msra.mxu0 0.0
    %899 = vmatpush.msra.mxu0 0.0
    %900 = vmatpush.msra.mxu0 0.0
    %901 = vmatpush.msra.mxu0 0.0
    %902 = vmatpush.msra.mxu0 0.0
    %903 = vmatpush.msra.mxu0 0.0
    %904 = vmatpush.msra.mxu0 0.0
    %905 = vmatpush.msra.mxu0 %v73
    %906 = vmatpush.msra.mxu0 %v72
    %907 = vmatpush.msra.mxu0 %v71
    %908 = vmatpush.msra.mxu0 %v70
    %909 = vmatpush.msra.mxu0 %v69
    %910 = vmatpush.msra.mxu0 %v68
    %911 = vmatpush.msra.mxu0 %v67
    %912 = vmatpush.msra.mxu0 %v66
    %913 = vmatmul.f32.gmra.mxu0 %v892
    %v914 = vpop.f32.mrf.mxu0
    %v915 = vadd.f32 %v889, %v914
    %916 = vmatmul.f32.gmra.mxu0 %v895
    %v917 = vpop.f32.mrf.mxu0
    %v918 = vadd.f32 %v889, %v917
    %919 = vdwg.mxu0
    %v920 = vadd.f32 %v855, %v915
    %v921 = vadd.f32 %v856, %v918
    %v922 = vsel %vm75, %v920, 0.0
    %923 = vadd.xlane.f32.xlu0 %v922
    %v924 = vpop.xlane.xlu0 %923
    %v925 = vsel %vm75, %v921, 0.0
    %926 = vadd.xlane.f32.xlu0 %v925
    %v927 = vpop.xlane.xlu0 %926
    %v928 = vmul.f32 %v924, %v812
    %v929 = vmul.f32 %v927, %v812
    %v930 = vsub.f32 %v920, %v928
    %v931 = vsub.f32 %v921, %v929
    %v932 = vmul.f32 %v930, %v930
    %v933 = vmul.f32 %v931, %v931
    %v934 = vsel %vm75, %v932, 0.0
    %935 = vadd.xlane.f32.xlu0 %v934
    %v936 = vpop.xlane.xlu0 %935
    %v937 = vsel %vm75, %v933, 0.0
    %938 = vadd.xlane.f32.xlu0 %v937
    %v939 = vpop.xlane.xlu0 %938
    %v940 = vmul.f32 %v936, %v812
    %v941 = vmul.f32 %v939, %v812
    %v942 = vadd.f32 %v940, 1e-05
    %v943 = vadd.f32 %v941, 1e-05
    %v944 = vrsqrt.pop %v942
    %v945 = vmul.f32 %v944, %v942
    %v946 = vmul.f32 %v945, %v944
    %v947 = vmul.f32 0.5, %v946
    %v948 = vsub.f32 1.5, %v947
    %v949 = vmul.f32 %v944, %v948
    %vm950 = vweird.f32 %v942
    %vm951 = vweird.f32 %v944
    %vm952 = vmor %vm950, %vm951
    %v953 = vsel %vm952, %v944, %v949
    %v954 = vrsqrt.pop %v943
    %v955 = vmul.f32 %v954, %v943
    %v956 = vmul.f32 %v955, %v954
    %v957 = vmul.f32 0.5, %v956
    %v958 = vsub.f32 1.5, %v957
    %v959 = vmul.f32 %v954, %v958
    %vm960 = vweird.f32 %v943
    %vm961 = vweird.f32 %v954
    %vm962 = vmor %vm960, %vm961
    %v963 = vsel %vm962, %v954, %v959
    %v964 = vmul.f32 %v930, %v953
    %v965 = vmul.f32 %v931, %v963
    %v966 = vperm.slane %v60, 3
    %v967 = vmul.f32 %v964, %v966
    %v968 = vmul.f32 %v965, %v966
    %v969 = vperm.slane %v60, 4
    %v970 = vadd.f32 %v967, %v969
    %v971 = vadd.f32 %v968, %v969
    %v972 = vld [vmem:[%s1 + $0xf8] sm:$0xff]
    %v973 = vld [vmem:[%s1 + $0x100] sm:$0xff]
    %v974 = vld [vmem:[%s1 + $0x108] sm:$0xff]
    %v975 = vld [vmem:[%s1 + $0x110] sm:$0xff]
    %v976 = vld [vmem:[%s1 + $0x118] sm:$0x1]
    %v977 = vld [vmem:[%s1 + $0x120] sm:$0xff]
    %v978 = vld [vmem:[%s1 + $0x128] sm:$0xff]
    %v979 = vld [vmem:[%s1 + $0x130] sm:$0xff]
    %v980 = vld [vmem:[%s1 + $0x138] sm:$0xff]
    %v981 = vld [vmem:[%s1 + $0x140] sm:$0x3f]
    %v982 = vld [vmem:[%s1 + $0x148] sm:$0xff]
    %v983 = vld [vmem:[%s1 + $0x150] sm:$0xff]
    %v984 = vld [vmem:[%s1 + $0x158] sm:$0xff]
    %v985 = vld [vmem:[%s1 + $0x160] sm:$0xff]
    %v986 = vld [vmem:[%s1 + $0x168] sm:$0x1]
    %v987 = vld [vmem:[%s1 + $0x170] sm:$0xff]
    %v988 = vld [vmem:[%s1 + $0x178] sm:$0xff]
    %v989 = vld [vmem:[%s1 + $0x180] sm:$0xff]
    %v990 = vld [vmem:[%s1 + $0x188] sm:$0xff]
    %v991 = vld [vmem:[%s1 + $0x190] sm:$0xff]
    %v992 = vld [vmem:[%s1 + $0x198] sm:$0xff]
    %v993 = vld [vmem:[%s1 + $0x1a0] sm:$0xff]
    %v994 = vld [vmem:[%s1 + $0x1a8] sm:$0xff]
    %v995 = vperm.slane %v976, 0
    %v997 = vsel %vm75, %v970, 0
    %v1000 = vsel %vm75, %v971, 0
    %1002 = vmatpush.msra.mxu0 0.0
    %1003 = vmatpush.msra.mxu0 0.0
    %1004 = vmatpush.msra.mxu0 0.0
    %1005 = vmatpush.msra.mxu0 0.0
    %1006 = vmatpush.msra.mxu0 0.0
    %1007 = vmatpush.msra.mxu0 0.0
    %1008 = vmatpush.msra.mxu0 0.0
    %1009 = vmatpush.msra.mxu0 0.0
    %1010 = vmatpush.msra.mxu0 0.0
    %1011 = vmatpush.msra.mxu0 0.0
    %1012 = vmatpush.msra.mxu0 0.0
    %1013 = vmatpush.msra.mxu0 0.0
    %1014 = vmatpush.msra.mxu0 %v975
    %1015 = vmatpush.msra.mxu0 %v974
    %1016 = vmatpush.msra.mxu0 %v973
    %1017 = vmatpush.msra.mxu0 %v972
    %1018 = vmatmul.f32.gmra.mxu0 %v997
    %v1019 = vpop.f32.mrf.mxu0
    %v1020 = vadd.f32 %v995, %v1019
    %1021 = vmatmul.f32.gmra.mxu0 %v1000
    %v1022 = vpop.f32.mrf.mxu0
    %v1023 = vadd.f32 %v995, %v1022
    %1024 = vdwg.mxu0
    %1027 = vrot.lane.b32.xlu0 %v1020, 120
    %v1028 = vpop.permute.xlu0 %1027
    %1029 = vrot.lane.b32.xlu0 %v1023, 120
    %v1030 = vpop.permute.xlu0 %1029
    %1031 = vrot.lane.b32.xlu0 %v1020, 112
    %v1032 = vpop.permute.xlu0 %1031
    %1033 = vrot.lane.b32.xlu0 %v1023, 112
    %v1034 = vpop.permute.xlu0 %1033
    %1035 = vrot.lane.b32.xlu0 %v1020, 104
    %v1036 = vpop.permute.xlu0 %1035
    %1037 = vrot.lane.b32.xlu0 %v1023, 104
    %v1038 = vpop.permute.xlu0 %1037
    %1039 = vrot.lane.b32.xlu0 %v1020, 96
    %v1040 = vpop.permute.xlu0 %1039
    %v1041 = vsel %vm121, %v1020, 0
    %v1043 = vsel %vm121, %v1040, 0
    %1045 = vmatpush.xpose.msra.mxu0 0.0
    %1046 = vmatpush.xpose.msra.mxu0 0.0
    %1047 = vmatpush.xpose.msra.mxu0 0.0
    %1048 = vmatpush.xpose.msra.mxu0 0.0
    %1049 = vmatpush.xpose.msra.mxu0 0.0
    %1050 = vmatpush.xpose.msra.mxu0 0.0
    %1051 = vmatpush.xpose.msra.mxu0 0.0
    %1052 = vmatpush.xpose.msra.mxu0 0.0
    %1053 = vmatpush.xpose.msra.mxu0 0.0
    %1054 = vmatpush.xpose.msra.mxu0 0.0
    %1055 = vmatpush.xpose.msra.mxu0 0.0
    %1056 = vmatpush.xpose.msra.mxu0 0.0
    %1057 = vmatpush.xpose.msra.mxu0 0.0
    %1058 = vmatpush.xpose.msra.mxu0 0.0
    %1059 = vmatpush.xpose.msra.mxu0 0.0
    %1060 = vmatpush.xpose.msra.mxu0 %v1043
    %1061 = vmatmul.f32.gmra.mxu0 %v1041
    %v1062 = vpop.f32.mrf.mxu0
    %v1063 = vadd.f32 0.0, %v1062
    %1064 = vdwg.mxu0
    %1065 = vrot.lane.b32.xlu0 %v1023, 96
    %v1066 = vpop.permute.xlu0 %1065
    %v1067 = vsel %vm121, %v1023, 0
    %v1069 = vsel %vm121, %v1066, 0
    %1071 = vmatpush.xpose.msra.mxu0 0.0
    %1072 = vmatpush.xpose.msra.mxu0 0.0
    %1073 = vmatpush.xpose.msra.mxu0 0.0
    %1074 = vmatpush.xpose.msra.mxu0 0.0
    %1075 = vmatpush.xpose.msra.mxu0 0.0
    %1076 = vmatpush.xpose.msra.mxu0 0.0
    %1077 = vmatpush.xpose.msra.mxu0 0.0
    %1078 = vmatpush.xpose.msra.mxu0 0.0
    %1079 = vmatpush.xpose.msra.mxu0 0.0
    %1080 = vmatpush.xpose.msra.mxu0 0.0
    %1081 = vmatpush.xpose.msra.mxu0 0.0
    %1082 = vmatpush.xpose.msra.mxu0 0.0
    %1083 = vmatpush.xpose.msra.mxu0 0.0
    %1084 = vmatpush.xpose.msra.mxu0 0.0
    %1085 = vmatpush.xpose.msra.mxu0 0.0
    %1086 = vmatpush.xpose.msra.mxu0 %v1069
    %1087 = vmatmul.f32.gmra.mxu0 %v1067
    %v1088 = vpop.f32.mrf.mxu0
    %v1089 = vadd.f32 0.0, %v1088
    %1090 = vdwg.mxu0
    %1091 = vrot.lane.b32.xlu0 %v1028, 96
    %v1092 = vpop.permute.xlu0 %1091
    %v1093 = vsel %vm121, %v1028, 0
    %v1095 = vsel %vm121, %v1092, 0
    %1097 = vmatpush.xpose.msra.mxu0 0.0
    %1098 = vmatpush.xpose.msra.mxu0 0.0
    %1099 = vmatpush.xpose.msra.mxu0 0.0
    %1100 = vmatpush.xpose.msra.mxu0 0.0
    %1101 = vmatpush.xpose.msra.mxu0 0.0
    %1102 = vmatpush.xpose.msra.mxu0 0.0
    %1103 = vmatpush.xpose.msra.mxu0 0.0
    %1104 = vmatpush.xpose.msra.mxu0 0.0
    %1105 = vmatpush.xpose.msra.mxu0 0.0
    %1106 = vmatpush.xpose.msra.mxu0 0.0
    %1107 = vmatpush.xpose.msra.mxu0 0.0
    %1108 = vmatpush.xpose.msra.mxu0 0.0
    %1109 = vmatpush.xpose.msra.mxu0 0.0
    %1110 = vmatpush.xpose.msra.mxu0 0.0
    %1111 = vmatpush.xpose.msra.mxu0 0.0
    %1112 = vmatpush.xpose.msra.mxu0 %v1095
    %1113 = vmatmul.f32.gmra.mxu0 %v1093
    %v1114 = vpop.f32.mrf.mxu0
    %v1115 = vadd.f32 0.0, %v1114
    %1116 = vdwg.mxu0
    %1117 = vrot.lane.b32.xlu0 %v1030, 96
    %v1118 = vpop.permute.xlu0 %1117
    %v1119 = vsel %vm121, %v1030, 0
    %v1121 = vsel %vm121, %v1118, 0
    %1123 = vmatpush.xpose.msra.mxu0 0.0
    %1124 = vmatpush.xpose.msra.mxu0 0.0
    %1125 = vmatpush.xpose.msra.mxu0 0.0
    %1126 = vmatpush.xpose.msra.mxu0 0.0
    %1127 = vmatpush.xpose.msra.mxu0 0.0
    %1128 = vmatpush.xpose.msra.mxu0 0.0
    %1129 = vmatpush.xpose.msra.mxu0 0.0
    %1130 = vmatpush.xpose.msra.mxu0 0.0
    %1131 = vmatpush.xpose.msra.mxu0 0.0
    %1132 = vmatpush.xpose.msra.mxu0 0.0
    %1133 = vmatpush.xpose.msra.mxu0 0.0
    %1134 = vmatpush.xpose.msra.mxu0 0.0
    %1135 = vmatpush.xpose.msra.mxu0 0.0
    %1136 = vmatpush.xpose.msra.mxu0 0.0
    %1137 = vmatpush.xpose.msra.mxu0 0.0
    %1138 = vmatpush.xpose.msra.mxu0 %v1121
    %1139 = vmatmul.f32.gmra.mxu0 %v1119
    %v1140 = vpop.f32.mrf.mxu0
    %v1141 = vadd.f32 0.0, %v1140
    %1142 = vdwg.mxu0
    %1143 = vrot.lane.b32.xlu0 %v1032, 96
    %v1144 = vpop.permute.xlu0 %1143
    %v1145 = vsel %vm121, %v1032, 0
    %v1147 = vsel %vm121, %v1144, 0
    %1149 = vmatpush.xpose.msra.mxu0 0.0
    %1150 = vmatpush.xpose.msra.mxu0 0.0
    %1151 = vmatpush.xpose.msra.mxu0 0.0
    %1152 = vmatpush.xpose.msra.mxu0 0.0
    %1153 = vmatpush.xpose.msra.mxu0 0.0
    %1154 = vmatpush.xpose.msra.mxu0 0.0
    %1155 = vmatpush.xpose.msra.mxu0 0.0
    %1156 = vmatpush.xpose.msra.mxu0 0.0
    %1157 = vmatpush.xpose.msra.mxu0 0.0
    %1158 = vmatpush.xpose.msra.mxu0 0.0
    %1159 = vmatpush.xpose.msra.mxu0 0.0
    %1160 = vmatpush.xpose.msra.mxu0 0.0
    %1161 = vmatpush.xpose.msra.mxu0 0.0
    %1162 = vmatpush.xpose.msra.mxu0 0.0
    %1163 = vmatpush.xpose.msra.mxu0 0.0
    %1164 = vmatpush.xpose.msra.mxu0 %v1147
    %1165 = vmatmul.f32.gmra.mxu0 %v1145
    %v1166 = vpop.f32.mrf.mxu0
    %v1167 = vadd.f32 0.0, %v1166
    %1168 = vdwg.mxu0
    %1169 = vrot.lane.b32.xlu0 %v1034, 96
    %v1170 = vpop.permute.xlu0 %1169
    %v1171 = vsel %vm121, %v1034, 0
    %v1173 = vsel %vm121, %v1170, 0
    %1175 = vmatpush.xpose.msra.mxu0 0.0
    %1176 = vmatpush.xpose.msra.mxu0 0.0
    %1177 = vmatpush.xpose.msra.mxu0 0.0
    %1178 = vmatpush.xpose.msra.mxu0 0.0
    %1179 = vmatpush.xpose.msra.mxu0 0.0
    %1180 = vmatpush.xpose.msra.mxu0 0.0
    %1181 = vmatpush.xpose.msra.mxu0 0.0
    %1182 = vmatpush.xpose.msra.mxu0 0.0
    %1183 = vmatpush.xpose.msra.mxu0 0.0
    %1184 = vmatpush.xpose.msra.mxu0 0.0
    %1185 = vmatpush.xpose.msra.mxu0 0.0
    %1186 = vmatpush.xpose.msra.mxu0 0.0
    %1187 = vmatpush.xpose.msra.mxu0 0.0
    %1188 = vmatpush.xpose.msra.mxu0 0.0
    %1189 = vmatpush.xpose.msra.mxu0 0.0
    %1190 = vmatpush.xpose.msra.mxu0 %v1173
    %1191 = vmatmul.f32.gmra.mxu0 %v1171
    %v1192 = vpop.f32.mrf.mxu0
    %v1193 = vadd.f32 0.0, %v1192
    %1194 = vdwg.mxu0
    %1195 = vrot.lane.b32.xlu0 %v1036, 96
    %v1196 = vpop.permute.xlu0 %1195
    %v1197 = vsel %vm121, %v1036, 0
    %v1199 = vsel %vm121, %v1196, 0
    %1201 = vmatpush.xpose.msra.mxu0 0.0
    %1202 = vmatpush.xpose.msra.mxu0 0.0
    %1203 = vmatpush.xpose.msra.mxu0 0.0
    %1204 = vmatpush.xpose.msra.mxu0 0.0
    %1205 = vmatpush.xpose.msra.mxu0 0.0
    %1206 = vmatpush.xpose.msra.mxu0 0.0
    %1207 = vmatpush.xpose.msra.mxu0 0.0
    %1208 = vmatpush.xpose.msra.mxu0 0.0
    %1209 = vmatpush.xpose.msra.mxu0 0.0
    %1210 = vmatpush.xpose.msra.mxu0 0.0
    %1211 = vmatpush.xpose.msra.mxu0 0.0
    %1212 = vmatpush.xpose.msra.mxu0 0.0
    %1213 = vmatpush.xpose.msra.mxu0 0.0
    %1214 = vmatpush.xpose.msra.mxu0 0.0
    %1215 = vmatpush.xpose.msra.mxu0 0.0
    %1216 = vmatpush.xpose.msra.mxu0 %v1199
    %1217 = vmatmul.f32.gmra.mxu0 %v1197
    %v1218 = vpop.f32.mrf.mxu0
    %v1219 = vadd.f32 0.0, %v1218
    %1220 = vdwg.mxu0
    %1221 = vrot.lane.b32.xlu0 %v1038, 96
    %v1222 = vpop.permute.xlu0 %1221
    %v1223 = vsel %vm121, %v1038, 0
    %v1225 = vsel %vm121, %v1222, 0
    %1227 = vmatpush.xpose.msra.mxu0 0.0
    %1228 = vmatpush.xpose.msra.mxu0 0.0
    %1229 = vmatpush.xpose.msra.mxu0 0.0
    %1230 = vmatpush.xpose.msra.mxu0 0.0
    %1231 = vmatpush.xpose.msra.mxu0 0.0
    %1232 = vmatpush.xpose.msra.mxu0 0.0
    %1233 = vmatpush.xpose.msra.mxu0 0.0
    %1234 = vmatpush.xpose.msra.mxu0 0.0
    %1235 = vmatpush.xpose.msra.mxu0 0.0
    %1236 = vmatpush.xpose.msra.mxu0 0.0
    %1237 = vmatpush.xpose.msra.mxu0 0.0
    %1238 = vmatpush.xpose.msra.mxu0 0.0
    %1239 = vmatpush.xpose.msra.mxu0 0.0
    %1240 = vmatpush.xpose.msra.mxu0 0.0
    %1241 = vmatpush.xpose.msra.mxu0 0.0
    %1242 = vmatpush.xpose.msra.mxu0 %v1225
    %1243 = vmatmul.f32.gmra.mxu0 %v1223
    %v1244 = vpop.f32.mrf.mxu0
    %v1245 = vadd.f32 0.0, %v1244
    %1246 = vdwg.mxu0
    %v1247 = vmul.f32 %v1063, 0.35355338
    %v1248 = vmul.f32 %v1089, 0.35355338
    %v1249 = vmul.f32 %v1115, 0.35355338
    %v1250 = vmul.f32 %v1141, 0.35355338
    %v1251 = vmul.f32 %v1167, 0.35355338
    %v1252 = vmul.f32 %v1193, 0.35355338
    %v1253 = vmul.f32 %v1219, 0.35355338
    %v1254 = vmul.f32 %v1245, 0.35355338
    %v1255 = vsel %vm121, %v1247, -inf
    %1256 = vmax.xlane.f32.xlu0 %v1255
    %v1257 = vpop.xlane.xlu0 %1256
    %v1258 = vsel %vm121, %v1248, -inf
    %1259 = vmax.xlane.f32.xlu0 %v1258
    %v1260 = vpop.xlane.xlu0 %1259
    %v1261 = vsel %vm121, %v1249, -inf
    %1262 = vmax.xlane.f32.xlu0 %v1261
    %v1263 = vpop.xlane.xlu0 %1262
    %v1264 = vsel %vm121, %v1250, -inf
    %1265 = vmax.xlane.f32.xlu0 %v1264
    %v1266 = vpop.xlane.xlu0 %1265
    %v1267 = vsel %vm121, %v1251, -inf
    %1268 = vmax.xlane.f32.xlu0 %v1267
    %v1269 = vpop.xlane.xlu0 %1268
    %v1270 = vsel %vm121, %v1252, -inf
    %1271 = vmax.xlane.f32.xlu0 %v1270
    %v1272 = vpop.xlane.xlu0 %1271
    %v1273 = vsel %vm121, %v1253, -inf
    %1274 = vmax.xlane.f32.xlu0 %v1273
    %v1275 = vpop.xlane.xlu0 %1274
    %v1276 = vsel %vm121, %v1254, -inf
    %1277 = vmax.xlane.f32.xlu0 %v1276
    %v1278 = vpop.xlane.xlu0 %1277
    %v1279 = vsub.f32 %v1247, %v1257
    %v1280 = vsub.f32 %v1248, %v1260
    %v1281 = vsub.f32 %v1249, %v1263
    %v1282 = vsub.f32 %v1250, %v1266
    %v1283 = vsub.f32 %v1251, %v1269
    %v1284 = vsub.f32 %v1252, %v1272
    %v1285 = vsub.f32 %v1253, %v1275
    %v1286 = vsub.f32 %v1254, %v1278
    %v1287 = vmul.f32 %v1279, 1.442695
    %v1288 = vpow.pop %v1287
    %v1289 = vmul.f32 %v1280, 1.442695
    %v1290 = vpow.pop %v1289
    %v1291 = vmul.f32 %v1281, 1.442695
    %v1292 = vpow.pop %v1291
    %v1293 = vmul.f32 %v1282, 1.442695
    %v1294 = vpow.pop %v1293
    %v1295 = vmul.f32 %v1283, 1.442695
    %v1296 = vpow.pop %v1295
    %v1297 = vmul.f32 %v1284, 1.442695
    %v1298 = vpow.pop %v1297
    %v1299 = vmul.f32 %v1285, 1.442695
    %v1300 = vpow.pop %v1299
    %v1301 = vmul.f32 %v1286, 1.442695
    %v1302 = vpow.pop %v1301
    %v1303 = vsel %vm121, %v1288, 0.0
    %1304 = vadd.xlane.f32.xlu0 %v1303
    %v1305 = vpop.xlane.xlu0 %1304
    %v1306 = vsel %vm121, %v1290, 0.0
    %1307 = vadd.xlane.f32.xlu0 %v1306
    %v1308 = vpop.xlane.xlu0 %1307
    %v1309 = vsel %vm121, %v1292, 0.0
    %1310 = vadd.xlane.f32.xlu0 %v1309
    %v1311 = vpop.xlane.xlu0 %1310
    %v1312 = vsel %vm121, %v1294, 0.0
    %1313 = vadd.xlane.f32.xlu0 %v1312
    %v1314 = vpop.xlane.xlu0 %1313
    %v1315 = vsel %vm121, %v1296, 0.0
    %1316 = vadd.xlane.f32.xlu0 %v1315
    %v1317 = vpop.xlane.xlu0 %1316
    %v1318 = vsel %vm121, %v1298, 0.0
    %1319 = vadd.xlane.f32.xlu0 %v1318
    %v1320 = vpop.xlane.xlu0 %1319
    %v1321 = vsel %vm121, %v1300, 0.0
    %1322 = vadd.xlane.f32.xlu0 %v1321
    %v1323 = vpop.xlane.xlu0 %1322
    %v1324 = vsel %vm121, %v1302, 0.0
    %1325 = vadd.xlane.f32.xlu0 %v1324
    %v1326 = vpop.xlane.xlu0 %1325
    %v1327 = vrcp.pop %v1305
    %v1328 = vmul.f32 %v1305, %v1327
    %v1329 = vsub.f32 1.0, %v1328
    %v1330 = vmul.f32 %v1327, %v1329
    %v1331 = vadd.f32 %v1327, %v1330
    %vm1332 = vweird.f32 %v1305
    %vm1333 = vweird.f32 %v1327
    %vm1334 = vmor %vm1332, %vm1333
    %v1335 = vsel %vm1334, %v1327, %v1331
    %v1336 = vand.u32 2147483647, %v1305
    %vm1337 = vcmp.eq.f32.partialorder %v1336, 8.507059e+37
    %v1338 = vand.u32 %v1305, 2147483648
    %v1339 = vor.u32 1.1754944e-38, %v1338
    %v1340 = vsel %vm1337, %v1339, %v1335
    %v1341 = vmul.f32 %v1288, %v1340
    %v1342 = vrcp.pop %v1308
    %v1343 = vmul.f32 %v1308, %v1342
    %v1344 = vsub.f32 1.0, %v1343
    %v1345 = vmul.f32 %v1342, %v1344
    %v1346 = vadd.f32 %v1342, %v1345
    %vm1347 = vweird.f32 %v1308
    %vm1348 = vweird.f32 %v1342
    %vm1349 = vmor %vm1347, %vm1348
    %v1350 = vsel %vm1349, %v1342, %v1346
    %v1351 = vand.u32 2147483647, %v1308
    %vm1352 = vcmp.eq.f32.partialorder %v1351, 8.507059e+37
    %v1353 = vand.u32 %v1308, 2147483648
    %v1354 = vor.u32 1.1754944e-38, %v1353
    %v1355 = vsel %vm1352, %v1354, %v1350
    %v1356 = vmul.f32 %v1290, %v1355
    %v1357 = vrcp.pop %v1311
    %v1358 = vmul.f32 %v1311, %v1357
    %v1359 = vsub.f32 1.0, %v1358
    %v1360 = vmul.f32 %v1357, %v1359
    %v1361 = vadd.f32 %v1357, %v1360
    %vm1362 = vweird.f32 %v1311
    %vm1363 = vweird.f32 %v1357
    %vm1364 = vmor %vm1362, %vm1363
    %v1365 = vsel %vm1364, %v1357, %v1361
    %v1366 = vand.u32 2147483647, %v1311
    %vm1367 = vcmp.eq.f32.partialorder %v1366, 8.507059e+37
    %v1368 = vand.u32 %v1311, 2147483648
    %v1369 = vor.u32 1.1754944e-38, %v1368
    %v1370 = vsel %vm1367, %v1369, %v1365
    %v1371 = vmul.f32 %v1292, %v1370
    %v1372 = vrcp.pop %v1314
    %v1373 = vmul.f32 %v1314, %v1372
    %v1374 = vsub.f32 1.0, %v1373
    %v1375 = vmul.f32 %v1372, %v1374
    %v1376 = vadd.f32 %v1372, %v1375
    %vm1377 = vweird.f32 %v1314
    %vm1378 = vweird.f32 %v1372
    %vm1379 = vmor %vm1377, %vm1378
    %v1380 = vsel %vm1379, %v1372, %v1376
    %v1381 = vand.u32 2147483647, %v1314
    %vm1382 = vcmp.eq.f32.partialorder %v1381, 8.507059e+37
    %v1383 = vand.u32 %v1314, 2147483648
    %v1384 = vor.u32 1.1754944e-38, %v1383
    %v1385 = vsel %vm1382, %v1384, %v1380
    %v1386 = vmul.f32 %v1294, %v1385
    %v1387 = vrcp.pop %v1317
    %v1388 = vmul.f32 %v1317, %v1387
    %v1389 = vsub.f32 1.0, %v1388
    %v1390 = vmul.f32 %v1387, %v1389
    %v1391 = vadd.f32 %v1387, %v1390
    %vm1392 = vweird.f32 %v1317
    %vm1393 = vweird.f32 %v1387
    %vm1394 = vmor %vm1392, %vm1393
    %v1395 = vsel %vm1394, %v1387, %v1391
    %v1396 = vand.u32 2147483647, %v1317
    %vm1397 = vcmp.eq.f32.partialorder %v1396, 8.507059e+37
    %v1398 = vand.u32 %v1317, 2147483648
    %v1399 = vor.u32 1.1754944e-38, %v1398
    %v1400 = vsel %vm1397, %v1399, %v1395
    %v1401 = vmul.f32 %v1296, %v1400
    %v1402 = vrcp.pop %v1320
    %v1403 = vmul.f32 %v1320, %v1402
    %v1404 = vsub.f32 1.0, %v1403
    %v1405 = vmul.f32 %v1402, %v1404
    %v1406 = vadd.f32 %v1402, %v1405
    %vm1407 = vweird.f32 %v1320
    %vm1408 = vweird.f32 %v1402
    %vm1409 = vmor %vm1407, %vm1408
    %v1410 = vsel %vm1409, %v1402, %v1406
    %v1411 = vand.u32 2147483647, %v1320
    %vm1412 = vcmp.eq.f32.partialorder %v1411, 8.507059e+37
    %v1413 = vand.u32 %v1320, 2147483648
    %v1414 = vor.u32 1.1754944e-38, %v1413
    %v1415 = vsel %vm1412, %v1414, %v1410
    %v1416 = vmul.f32 %v1298, %v1415
    %v1417 = vrcp.pop %v1323
    %v1418 = vmul.f32 %v1323, %v1417
    %v1419 = vsub.f32 1.0, %v1418
    %v1420 = vmul.f32 %v1417, %v1419
    %v1421 = vadd.f32 %v1417, %v1420
    %vm1422 = vweird.f32 %v1323
    %vm1423 = vweird.f32 %v1417
    %vm1424 = vmor %vm1422, %vm1423
    %v1425 = vsel %vm1424, %v1417, %v1421
    %v1426 = vand.u32 2147483647, %v1323
    %vm1427 = vcmp.eq.f32.partialorder %v1426, 8.507059e+37
    %v1428 = vand.u32 %v1323, 2147483648
    %v1429 = vor.u32 1.1754944e-38, %v1428
    %v1430 = vsel %vm1427, %v1429, %v1425
    %v1431 = vmul.f32 %v1300, %v1430
    %v1432 = vrcp.pop %v1326
    %v1433 = vmul.f32 %v1326, %v1432
    %v1434 = vsub.f32 1.0, %v1433
    %v1435 = vmul.f32 %v1432, %v1434
    %v1436 = vadd.f32 %v1432, %v1435
    %vm1437 = vweird.f32 %v1326
    %vm1438 = vweird.f32 %v1432
    %vm1439 = vmor %vm1437, %vm1438
    %v1440 = vsel %vm1439, %v1432, %v1436
    %v1441 = vand.u32 2147483647, %v1326
    %vm1442 = vcmp.eq.f32.partialorder %v1441, 8.507059e+37
    %v1443 = vand.u32 %v1326, 2147483648
    %v1444 = vor.u32 1.1754944e-38, %v1443
    %v1445 = vsel %vm1442, %v1444, %v1440
    %v1446 = vmul.f32 %v1302, %v1445
    %1447 = vrot.lane.b32.xlu0 %v1020, 64
    %v1448 = vpop.permute.xlu0 %1447
    %v1451 = vsel %vm121, %v1341, 0
    %1453 = vmatpush.msra.mxu0 0.0
    %1454 = vmatpush.msra.mxu0 0.0
    %1455 = vmatpush.msra.mxu0 0.0
    %1456 = vmatpush.msra.mxu0 0.0
    %1457 = vmatpush.msra.mxu0 0.0
    %1458 = vmatpush.msra.mxu0 0.0
    %1459 = vmatpush.msra.mxu0 0.0
    %1460 = vmatpush.msra.mxu0 0.0
    %1461 = vmatpush.msra.mxu0 0.0
    %1462 = vmatpush.msra.mxu0 0.0
    %1463 = vmatpush.msra.mxu0 0.0
    %1464 = vmatpush.msra.mxu0 0.0
    %1465 = vmatpush.msra.mxu0 0.0
    %1466 = vmatpush.msra.mxu0 0.0
    %1467 = vmatpush.msra.mxu0 0.0
    %1468 = vmatpush.msra.mxu0 %v1448
    %1469 = vmatmul.f32.gmra.mxu0 %v1451
    %v1470 = vpop.f32.mrf.mxu0
    %v1471 = vadd.f32 0.0, %v1470
    %1472 = vdwg.mxu0
    %1473 = vrot.lane.b32.xlu0 %v1023, 64
    %v1474 = vpop.permute.xlu0 %1473
    %v1477 = vsel %vm121, %v1356, 0
    %1479 = vmatpush.msra.mxu0 0.0
    %1480 = vmatpush.msra.mxu0 0.0
    %1481 = vmatpush.msra.mxu0 0.0
    %1482 = vmatpush.msra.mxu0 0.0
    %1483 = vmatpush.msra.mxu0 0.0
    %1484 = vmatpush.msra.mxu0 0.0
    %1485 = vmatpush.msra.mxu0 0.0
    %1486 = vmatpush.msra.mxu0 0.0
    %1487 = vmatpush.msra.mxu0 0.0
    %1488 = vmatpush.msra.mxu0 0.0
    %1489 = vmatpush.msra.mxu0 0.0
    %1490 = vmatpush.msra.mxu0 0.0
    %1491 = vmatpush.msra.mxu0 0.0
    %1492 = vmatpush.msra.mxu0 0.0
    %1493 = vmatpush.msra.mxu0 0.0
    %1494 = vmatpush.msra.mxu0 %v1474
    %1495 = vmatmul.f32.gmra.mxu0 %v1477
    %v1496 = vpop.f32.mrf.mxu0
    %v1497 = vadd.f32 0.0, %v1496
    %1498 = vdwg.mxu0
    %1499 = vrot.lane.b32.xlu0 %v1028, 64
    %v1500 = vpop.permute.xlu0 %1499
    %v1503 = vsel %vm121, %v1371, 0
    %1505 = vmatpush.msra.mxu0 0.0
    %1506 = vmatpush.msra.mxu0 0.0
    %1507 = vmatpush.msra.mxu0 0.0
    %1508 = vmatpush.msra.mxu0 0.0
    %1509 = vmatpush.msra.mxu0 0.0
    %1510 = vmatpush.msra.mxu0 0.0
    %1511 = vmatpush.msra.mxu0 0.0
    %1512 = vmatpush.msra.mxu0 0.0
    %1513 = vmatpush.msra.mxu0 0.0
    %1514 = vmatpush.msra.mxu0 0.0
    %1515 = vmatpush.msra.mxu0 0.0
    %1516 = vmatpush.msra.mxu0 0.0
    %1517 = vmatpush.msra.mxu0 0.0
    %1518 = vmatpush.msra.mxu0 0.0
    %1519 = vmatpush.msra.mxu0 0.0
    %1520 = vmatpush.msra.mxu0 %v1500
    %1521 = vmatmul.f32.gmra.mxu0 %v1503
    %v1522 = vpop.f32.mrf.mxu0
    %v1523 = vadd.f32 0.0, %v1522
    %1524 = vdwg.mxu0
    %1525 = vrot.lane.b32.xlu0 %v1030, 64
    %v1526 = vpop.permute.xlu0 %1525
    %v1529 = vsel %vm121, %v1386, 0
    %1531 = vmatpush.msra.mxu0 0.0
    %1532 = vmatpush.msra.mxu0 0.0
    %1533 = vmatpush.msra.mxu0 0.0
    %1534 = vmatpush.msra.mxu0 0.0
    %1535 = vmatpush.msra.mxu0 0.0
    %1536 = vmatpush.msra.mxu0 0.0
    %1537 = vmatpush.msra.mxu0 0.0
    %1538 = vmatpush.msra.mxu0 0.0
    %1539 = vmatpush.msra.mxu0 0.0
    %1540 = vmatpush.msra.mxu0 0.0
    %1541 = vmatpush.msra.mxu0 0.0
    %1542 = vmatpush.msra.mxu0 0.0
    %1543 = vmatpush.msra.mxu0 0.0
    %1544 = vmatpush.msra.mxu0 0.0
    %1545 = vmatpush.msra.mxu0 0.0
    %1546 = vmatpush.msra.mxu0 %v1526
    %1547 = vmatmul.f32.gmra.mxu0 %v1529
    %v1548 = vpop.f32.mrf.mxu0
    %v1549 = vadd.f32 0.0, %v1548
    %1550 = vdwg.mxu0
    %1551 = vrot.lane.b32.xlu0 %v1032, 64
    %v1552 = vpop.permute.xlu0 %1551
    %v1555 = vsel %vm121, %v1401, 0
    %1557 = vmatpush.msra.mxu0 0.0
    %1558 = vmatpush.msra.mxu0 0.0
    %1559 = vmatpush.msra.mxu0 0.0
    %1560 = vmatpush.msra.mxu0 0.0
    %1561 = vmatpush.msra.mxu0 0.0
    %1562 = vmatpush.msra.mxu0 0.0
    %1563 = vmatpush.msra.mxu0 0.0
    %1564 = vmatpush.msra.mxu0 0.0
    %1565 = vmatpush.msra.mxu0 0.0
    %1566 = vmatpush.msra.mxu0 0.0
    %1567 = vmatpush.msra.mxu0 0.0
    %1568 = vmatpush.msra.mxu0 0.0
    %1569 = vmatpush.msra.mxu0 0.0
    %1570 = vmatpush.msra.mxu0 0.0
    %1571 = vmatpush.msra.mxu0 0.0
    %1572 = vmatpush.msra.mxu0 %v1552
    %1573 = vmatmul.f32.gmra.mxu0 %v1555
    %v1574 = vpop.f32.mrf.mxu0
    %v1575 = vadd.f32 0.0, %v1574
    %1576 = vdwg.mxu0
    %1577 = vrot.lane.b32.xlu0 %v1034, 64
    %v1578 = vpop.permute.xlu0 %1577
    %v1581 = vsel %vm121, %v1416, 0
    %1583 = vmatpush.msra.mxu0 0.0
    %1584 = vmatpush.msra.mxu0 0.0
    %1585 = vmatpush.msra.mxu0 0.0
    %1586 = vmatpush.msra.mxu0 0.0
    %1587 = vmatpush.msra.mxu0 0.0
    %1588 = vmatpush.msra.mxu0 0.0
    %1589 = vmatpush.msra.mxu0 0.0
    %1590 = vmatpush.msra.mxu0 0.0
    %1591 = vmatpush.msra.mxu0 0.0
    %1592 = vmatpush.msra.mxu0 0.0
    %1593 = vmatpush.msra.mxu0 0.0
    %1594 = vmatpush.msra.mxu0 0.0
    %1595 = vmatpush.msra.mxu0 0.0
    %1596 = vmatpush.msra.mxu0 0.0
    %1597 = vmatpush.msra.mxu0 0.0
    %1598 = vmatpush.msra.mxu0 %v1578
    %1599 = vmatmul.f32.gmra.mxu0 %v1581
    %v1600 = vpop.f32.mrf.mxu0
    %v1601 = vadd.f32 0.0, %v1600
    %1602 = vdwg.mxu0
    %1603 = vrot.lane.b32.xlu0 %v1036, 64
    %v1604 = vpop.permute.xlu0 %1603
    %v1607 = vsel %vm121, %v1431, 0
    %1609 = vmatpush.msra.mxu0 0.0
    %1610 = vmatpush.msra.mxu0 0.0
    %1611 = vmatpush.msra.mxu0 0.0
    %1612 = vmatpush.msra.mxu0 0.0
    %1613 = vmatpush.msra.mxu0 0.0
    %1614 = vmatpush.msra.mxu0 0.0
    %1615 = vmatpush.msra.mxu0 0.0
    %1616 = vmatpush.msra.mxu0 0.0
    %1617 = vmatpush.msra.mxu0 0.0
    %1618 = vmatpush.msra.mxu0 0.0
    %1619 = vmatpush.msra.mxu0 0.0
    %1620 = vmatpush.msra.mxu0 0.0
    %1621 = vmatpush.msra.mxu0 0.0
    %1622 = vmatpush.msra.mxu0 0.0
    %1623 = vmatpush.msra.mxu0 0.0
    %1624 = vmatpush.msra.mxu0 %v1604
    %1625 = vmatmul.f32.gmra.mxu0 %v1607
    %v1626 = vpop.f32.mrf.mxu0
    %v1627 = vadd.f32 0.0, %v1626
    %1628 = vdwg.mxu0
    %1629 = vrot.lane.b32.xlu0 %v1038, 64
    %v1630 = vpop.permute.xlu0 %1629
    %v1633 = vsel %vm121, %v1446, 0
    %1635 = vmatpush.msra.mxu0 0.0
    %1636 = vmatpush.msra.mxu0 0.0
    %1637 = vmatpush.msra.mxu0 0.0
    %1638 = vmatpush.msra.mxu0 0.0
    %1639 = vmatpush.msra.mxu0 0.0
    %1640 = vmatpush.msra.mxu0 0.0
    %1641 = vmatpush.msra.mxu0 0.0
    %1642 = vmatpush.msra.mxu0 0.0
    %1643 = vmatpush.msra.mxu0 0.0
    %1644 = vmatpush.msra.mxu0 0.0
    %1645 = vmatpush.msra.mxu0 0.0
    %1646 = vmatpush.msra.mxu0 0.0
    %1647 = vmatpush.msra.mxu0 0.0
    %1648 = vmatpush.msra.mxu0 0.0
    %1649 = vmatpush.msra.mxu0 0.0
    %1650 = vmatpush.msra.mxu0 %v1630
    %1651 = vmatmul.f32.gmra.mxu0 %v1633
    %v1652 = vpop.f32.mrf.mxu0
    %v1653 = vadd.f32 0.0, %v1652
    %1654 = vdwg.mxu0
    %1657 = vrot.lane.b32.xlu0 %v1523, 8
    %v1658 = vpop.permute.xlu0 %1657
    %1659 = vrot.lane.b32.xlu0 %v1549, 8
    %v1660 = vpop.permute.xlu0 %1659
    %1665 = vrot.lane.b32.xlu0 %v1575, 16
    %v1666 = vpop.permute.xlu0 %1665
    %1667 = vrot.lane.b32.xlu0 %v1601, 16
    %v1668 = vpop.permute.xlu0 %1667
    %1673 = vrot.lane.b32.xlu0 %v1627, 24
    %v1674 = vpop.permute.xlu0 %1673
    %1675 = vrot.lane.b32.xlu0 %v1653, 24
    %v1676 = vpop.permute.xlu0 %1675
    %v1679 = vsel %vm121, %v1471, %v1658
    %v1680 = vsel %vm121, %v1497, %v1660
    %v1681 = vsel %vm762, %v1679, %v1666
    %v1682 = vsel %vm762, %v1680, %v1668
    %v1683 = vsel %vm765, %v1681, %v1674
    %v1684 = vsel %vm765, %v1682, %v1676
    %v1685 = vperm.slane %v981, 0
    %v1687 = vsel %vm75, %v1683, 0
    %v1690 = vsel %vm75, %v1684, 0
    %1692 = vmatpush.msra.mxu0 0.0
    %1693 = vmatpush.msra.mxu0 0.0
    %1694 = vmatpush.msra.mxu0 0.0
    %1695 = vmatpush.msra.mxu0 0.0
    %1696 = vmatpush.msra.mxu0 0.0
    %1697 = vmatpush.msra.mxu0 0.0
    %1698 = vmatpush.msra.mxu0 0.0
    %1699 = vmatpush.msra.mxu0 0.0
    %1700 = vmatpush.msra.mxu0 0.0
    %1701 = vmatpush.msra.mxu0 0.0
    %1702 = vmatpush.msra.mxu0 0.0
    %1703 = vmatpush.msra.mxu0 0.0
    %1704 = vmatpush.msra.mxu0 %v980
    %1705 = vmatpush.msra.mxu0 %v979
    %1706 = vmatpush.msra.mxu0 %v978
    %1707 = vmatpush.msra.mxu0 %v977
    %1708 = vmatmul.f32.gmra.mxu0 %v1687
    %v1709 = vpop.f32.mrf.mxu0
    %v1710 = vadd.f32 %v1685, %v1709
    %1711 = vmatmul.f32.gmra.mxu0 %v1690
    %v1712 = vpop.f32.mrf.mxu0
    %v1713 = vadd.f32 %v1685, %v1712
    %1714 = vdwg.mxu0
    %v1715 = vadd.f32 %v970, %v1710
    %v1716 = vadd.f32 %v971, %v1713
    %v1717 = vsel %vm75, %v1715, 0.0
    %1718 = vadd.xlane.f32.xlu0 %v1717
    %v1719 = vpop.xlane.xlu0 %1718
    %v1720 = vsel %vm75, %v1716, 0.0
    %1721 = vadd.xlane.f32.xlu0 %v1720
    %v1722 = vpop.xlane.xlu0 %1721
    %v1723 = vmul.f32 %v1719, %v812
    %v1724 = vmul.f32 %v1722, %v812
    %v1725 = vsub.f32 %v1715, %v1723
    %v1726 = vsub.f32 %v1716, %v1724
    %v1727 = vmul.f32 %v1725, %v1725
    %v1728 = vmul.f32 %v1726, %v1726
    %v1729 = vsel %vm75, %v1727, 0.0
    %1730 = vadd.xlane.f32.xlu0 %v1729
    %v1731 = vpop.xlane.xlu0 %1730
    %v1732 = vsel %vm75, %v1728, 0.0
    %1733 = vadd.xlane.f32.xlu0 %v1732
    %v1734 = vpop.xlane.xlu0 %1733
    %v1735 = vmul.f32 %v1731, %v812
    %v1736 = vmul.f32 %v1734, %v812
    %v1737 = vadd.f32 %v1735, 1e-05
    %v1738 = vadd.f32 %v1736, 1e-05
    %v1739 = vrsqrt.pop %v1737
    %v1740 = vmul.f32 %v1739, %v1737
    %v1741 = vmul.f32 %v1740, %v1739
    %v1742 = vmul.f32 0.5, %v1741
    %v1743 = vsub.f32 1.5, %v1742
    %v1744 = vmul.f32 %v1739, %v1743
    %vm1745 = vweird.f32 %v1737
    %vm1746 = vweird.f32 %v1739
    %vm1747 = vmor %vm1745, %vm1746
    %v1748 = vsel %vm1747, %v1739, %v1744
    %v1749 = vrsqrt.pop %v1738
    %v1750 = vmul.f32 %v1749, %v1738
    %v1751 = vmul.f32 %v1750, %v1749
    %v1752 = vmul.f32 0.5, %v1751
    %v1753 = vsub.f32 1.5, %v1752
    %v1754 = vmul.f32 %v1749, %v1753
    %vm1755 = vweird.f32 %v1738
    %vm1756 = vweird.f32 %v1749
    %vm1757 = vmor %vm1755, %vm1756
    %v1758 = vsel %vm1757, %v1749, %v1754
    %v1759 = vmul.f32 %v1725, %v1748
    %v1760 = vmul.f32 %v1726, %v1758
    %v1761 = vperm.slane %v981, 1
    %v1762 = vmul.f32 %v1759, %v1761
    %v1763 = vmul.f32 %v1760, %v1761
    %v1764 = vperm.slane %v981, 2
    %v1765 = vadd.f32 %v1762, %v1764
    %v1766 = vadd.f32 %v1763, %v1764
    %v1767 = vperm.slane %v986, 0
    %v1769 = vsel %vm75, %v1765, 0
    %v1772 = vsel %vm75, %v1766, 0
    %1774 = vmatpush.msra.mxu0 0.0
    %1775 = vmatpush.msra.mxu0 0.0
    %1776 = vmatpush.msra.mxu0 0.0
    %1777 = vmatpush.msra.mxu0 0.0
    %1778 = vmatpush.msra.mxu0 0.0
    %1779 = vmatpush.msra.mxu0 0.0
    %1780 = vmatpush.msra.mxu0 0.0
    %1781 = vmatpush.msra.mxu0 0.0
    %1782 = vmatpush.msra.mxu0 0.0
    %1783 = vmatpush.msra.mxu0 0.0
    %1784 = vmatpush.msra.mxu0 0.0
    %1785 = vmatpush.msra.mxu0 0.0
    %1786 = vmatpush.msra.mxu0 %v985
    %1787 = vmatpush.msra.mxu0 %v984
    %1788 = vmatpush.msra.mxu0 %v983
    %1789 = vmatpush.msra.mxu0 %v982
    %1790 = vmatmul.f32.gmra.mxu0 %v1769
    %v1791 = vpop.f32.mrf.mxu0
    %v1792 = vadd.f32 %v1767, %v1791
    %1793 = vmatmul.f32.gmra.mxu0 %v1772
    %v1794 = vpop.f32.mrf.mxu0
    %v1795 = vadd.f32 %v1767, %v1794
    %1796 = vdwg.mxu0
    %v1797 = vmax.f32 %v1792, 0.0
    %v1798 = vmax.f32 %v1795, 0.0
    %v1799 = vperm.slane %v981, 5
    %v1801 = vsel %vm890, %v1797, 0
    %v1804 = vsel %vm890, %v1798, 0
    %1806 = vmatpush.msra.mxu0 0.0
    %1807 = vmatpush.msra.mxu0 0.0
    %1808 = vmatpush.msra.mxu0 0.0
    %1809 = vmatpush.msra.mxu0 0.0
    %1810 = vmatpush.msra.mxu0 0.0
    %1811 = vmatpush.msra.mxu0 0.0
    %1812 = vmatpush.msra.mxu0 0.0
    %1813 = vmatpush.msra.mxu0 0.0
    %1814 = vmatpush.msra.mxu0 %v994
    %1815 = vmatpush.msra.mxu0 %v993
    %1816 = vmatpush.msra.mxu0 %v992
    %1817 = vmatpush.msra.mxu0 %v991
    %1818 = vmatpush.msra.mxu0 %v990
    %1819 = vmatpush.msra.mxu0 %v989
    %1820 = vmatpush.msra.mxu0 %v988
    %1821 = vmatpush.msra.mxu0 %v987
    %1822 = vmatmul.f32.gmra.mxu0 %v1801
    %v1823 = vpop.f32.mrf.mxu0
    %v1824 = vadd.f32 %v1799, %v1823
    %1825 = vmatmul.f32.gmra.mxu0 %v1804
    %v1826 = vpop.f32.mrf.mxu0
    %v1827 = vadd.f32 %v1799, %v1826
    %1828 = vdwg.mxu0
    %v1829 = vadd.f32 %v1765, %v1824
    %v1830 = vadd.f32 %v1766, %v1827
    %v1831 = vsel %vm75, %v1829, 0.0
    %1832 = vadd.xlane.f32.xlu0 %v1831
    %v1833 = vpop.xlane.xlu0 %1832
    %v1834 = vsel %vm75, %v1830, 0.0
    %1835 = vadd.xlane.f32.xlu0 %v1834
    %v1836 = vpop.xlane.xlu0 %1835
    %v1837 = vmul.f32 %v1833, %v812
    %v1838 = vmul.f32 %v1836, %v812
    %v1839 = vsub.f32 %v1829, %v1837
    %v1840 = vsub.f32 %v1830, %v1838
    %v1841 = vmul.f32 %v1839, %v1839
    %v1842 = vmul.f32 %v1840, %v1840
    %v1843 = vsel %vm75, %v1841, 0.0
    %1844 = vadd.xlane.f32.xlu0 %v1843
    %v1845 = vpop.xlane.xlu0 %1844
    %v1846 = vsel %vm75, %v1842, 0.0
    %1847 = vadd.xlane.f32.xlu0 %v1846
    %v1848 = vpop.xlane.xlu0 %1847
    %v1849 = vmul.f32 %v1845, %v812
    %v1850 = vmul.f32 %v1848, %v812
    %v1851 = vadd.f32 %v1849, 1e-05
    %v1852 = vadd.f32 %v1850, 1e-05
    %v1853 = vrsqrt.pop %v1851
    %v1854 = vmul.f32 %v1853, %v1851
    %v1855 = vmul.f32 %v1854, %v1853
    %v1856 = vmul.f32 0.5, %v1855
    %v1857 = vsub.f32 1.5, %v1856
    %v1858 = vmul.f32 %v1853, %v1857
    %vm1859 = vweird.f32 %v1851
    %vm1860 = vweird.f32 %v1853
    %vm1861 = vmor %vm1859, %vm1860
    %v1862 = vsel %vm1861, %v1853, %v1858
    %v1863 = vrsqrt.pop %v1852
    %v1864 = vmul.f32 %v1863, %v1852
    %v1865 = vmul.f32 %v1864, %v1863
    %v1866 = vmul.f32 0.5, %v1865
    %v1867 = vsub.f32 1.5, %v1866
    %v1868 = vmul.f32 %v1863, %v1867
    %vm1869 = vweird.f32 %v1852
    %vm1870 = vweird.f32 %v1863
    %vm1871 = vmor %vm1869, %vm1870
    %v1872 = vsel %vm1871, %v1863, %v1868
    %v1873 = vmul.f32 %v1839, %v1862
    %v1874 = vmul.f32 %v1840, %v1872
    %v1875 = vperm.slane %v981, 3
    %v1876 = vmul.f32 %v1873, %v1875
    %v1877 = vmul.f32 %v1874, %v1875
    %v1878 = vperm.slane %v981, 4
    %v1879 = vadd.f32 %v1876, %v1878
    %v1880 = vadd.f32 %v1877, %v1878
    %v1882 = vrot.slane %v1879, 7
    %v1885 = vrot.slane %v1880, 6
    %vm1887 = vcmask 1040384
    %v1888 = vsel %vm1887, %v1882, %v1885
    %v1889 = vld [vmem:[%s1 + $0x18] sm:$0xff]
    %v1890 = vld [vmem:[%s1 + $0x20] sm:$0xff]
    %v1891 = vld [vmem:[%s1 + $0x28] sm:$0xff]
    %v1892 = vld [vmem:[%s1 + $0x30] sm:$0xff]
    %v1893 = vld [vmem:[%s1 + $0x38] sm:$0x1]
    %v1894 = vperm.slane %v1893, 0
    %v1896 = vsel %vm75, %v1888, 0
    %1898 = vmatpush.msra.mxu0 0.0
    %1899 = vmatpush.msra.mxu0 0.0
    %1900 = vmatpush.msra.mxu0 0.0
    %1901 = vmatpush.msra.mxu0 0.0
    %1902 = vmatpush.msra.mxu0 0.0
    %1903 = vmatpush.msra.mxu0 0.0
    %1904 = vmatpush.msra.mxu0 0.0
    %1905 = vmatpush.msra.mxu0 0.0
    %1906 = vmatpush.msra.mxu0 0.0
    %1907 = vmatpush.msra.mxu0 0.0
    %1908 = vmatpush.msra.mxu0 0.0
    %1909 = vmatpush.msra.mxu0 0.0
    %1910 = vmatpush.msra.mxu0 %v1892
    %1911 = vmatpush.msra.mxu0 %v1891
    %1912 = vmatpush.msra.mxu0 %v1890
    %1913 = vmatpush.msra.mxu0 %v1889
    %1914 = vmatmul.f32.gmra.mxu0 %v1896
    %v1915 = vpop.f32.mrf.mxu0
    %v1916 = vadd.f32 %v1894, %v1915
    %1917 = vdwg.mxu0
    %vm1918 = vcmask 17408
    %1919 = vst.msk [vmem:[#allocation2] sm:$0x3] %vm1918, %v1916
    // Predicated region
    $region10: #{tpu_custom_call.1} parent=1 // pred_check
      _
    $region11: #{tpu_custom_call.1} parent=1 // pred_check_branch
      %1921 = sbr.rel (0) target = $region13
    $region12: #{tpu_custom_call.1} parent=1 // pred_region
      %1923 = vsyncadd [#allocation3], 0
      %s1925 = sshll.u32 [#allocation2], 4
      %s1926 = int_to_ptr.vmem [resolvable:$true] %s1925
      %s1927 = sshll.u32 %s2, 4
      %s1928 = int_to_ptr.hbm [resolvable:$true] %s1927
      %1930 = dma.vmem_to_hbm [thread:$0]  %s1926, 32, %s1928, [#allocation3]
    $region13: #{tpu_custom_call.1} parent=1 // pred_fallthru
      _
    // Predicated region
    $region14: #{tpu_custom_call.1} parent=1 // pred_check
      _
    $region15: #{tpu_custom_call.1} parent=1 // pred_check_branch
      %1932 = sbr.rel (0) target = $region17
    $region16: #{tpu_custom_call.1} parent=1 // pred_region
      %1934 = dma.done [#allocation3], 32
    $region17: #{tpu_custom_call.1} parent=1 // pred_fallthru
      _
    %1935 = vsyncpa [#allocation3], 1

</llo_original>
